<compile_context>
chip_gen: v7x
topology: tpu7x:2x2x1
jax: 0.10.0
libtpu: 0.0.40
codegen_flags: <defaults>
</compile_context>

<pallas_src>
import functools

import jax
import jax.numpy as jnp
from jax import lax
from jax.experimental import pallas as pl
from jax.experimental.pallas import tpu as pltpu

EPS = 1e-5


def _round_up(n, m):
    return ((n + m - 1) // m) * m


# ------------------------------ fused kernel ------------------------------
# grid = (2, NT): phase 0 accumulates BN sum/sumsq over all P-tiles; phase 1
# re-streams x, recomputes h_pre, applies folded BN + relu, accumulates the
# per-graph segment sums (0/1 mask matmul) and, on the last tile, runs the
# mean-scaling, PairNet.fc3 (moved after the mean), fc1 -> bn1 -> relu -> fc2.
def _tgnn_kernel(P, G, has_partial,
                 x_ref, starts_ref, counts_ref,
                 wemb_ref, bemb_ref, wp1_ref, bp1_ref,
                 gp1_ref, bep1_ref, wp3_ref, bp3_ref,
                 wf1_ref, bf1_ref, g1_ref, be1_ref, wf2_ref, bf2_ref,
                 out_ref,
                 sum_sc, sq_sc, scale_sc, shift_sc, hg_acc):
    f32 = jnp.float32
    ph = pl.program_id(0)          # 0: statistics pass, 1: apply/readout/head
    t = pl.program_id(1)           # P-tile index
    NT = pl.num_programs(1)
    TP = x_ref.shape[0]
    G_pad = starts_ref.shape[0]

    # Recompute h_pre from x in both phases (no [P,256] HBM round-trip).
    x = x_ref[...]                                                  # [TP, 2A+B]
    e = jnp.maximum(
        jnp.dot(x, wemb_ref[...], preferred_element_type=f32) + bemb_ref[...],
        0.0)                                                        # [TP, 320]
    hpre = jnp.dot(e, wp1_ref[...], preferred_element_type=f32) + bp1_ref[...]

    def gated(accum, value):
        # Only the final (partial) tile pays for the padding mask.
        if not has_partial:
            accum(value)
        else:
            @pl.when(t < NT - 1)
            def _():
                accum(value)

            @pl.when(t == NT - 1)
            def _():
                row = t * TP + lax.broadcasted_iota(jnp.int32, (TP, 1), 0)
                accum(jnp.where(row < P, value, 0.0))

    # ----------------------- phase 0: BN sum / sumsq -----------------------
    @pl.when(ph == 0)
    def _phase0():
        @pl.when(t == 0)
        def _():
            sum_sc[...] = jnp.zeros_like(sum_sc)
            sq_sc[...] = jnp.zeros_like(sq_sc)

        def accum_stats(h):
            sum_sc[...] += jnp.sum(h, axis=0, keepdims=True)
            sq_sc[...] += jnp.sum(h * h, axis=0, keepdims=True)

        gated(accum_stats, hpre)

    # --------- phase 1: folded BN + relu + segment mean + head ---------
    @pl.when(ph == 1)
    def _phase1():
        @pl.when(t == 0)
        def _():
            inv_p = 1.0 / P
            mu = sum_sc[...] * inv_p
            var = jnp.maximum(sq_sc[...] * inv_p - mu * mu, 0.0)   # clamp
            s = gp1_ref[...] * lax.rsqrt(var + EPS)
            scale_sc[...] = s
            shift_sc[...] = bep1_ref[...] - mu * s
            hg_acc[...] = jnp.zeros_like(hg_acc)

        # Folded BN apply: 2 VPU ops per element instead of 4.
        h = jnp.maximum(hpre * scale_sc[...] + shift_sc[...], 0.0)  # [TP, 256]

        starts = starts_ref[...]                                    # [G_pad, 1]
        counts = counts_ref[...]                                    # [G_pad, 1]

        def accum_seg(hv):
            pos = t * TP + lax.broadcasted_iota(jnp.int32, (G_pad, TP), 1)
            mask = ((pos >= starts) & (pos < starts + counts)).astype(f32)
            hg_acc[...] += jnp.dot(mask, hv, preferred_element_type=f32)

        gated(accum_seg, h)

        @pl.when(t == NT - 1)
        def _():
            inv_c = 1.0 / jnp.maximum(counts.astype(f32), 1.0)      # empty guard
            hg = hg_acc[...] * inv_c                                # segment means
            # PairNet.fc3 moved after the mean (mean commutes with affine).
            hg = jnp.dot(hg, wp3_ref[...], preferred_element_type=f32) + bp3_ref[...]
            h2 = jnp.dot(hg, wf1_ref[...], preferred_element_type=f32) + bf1_ref[...]
            # Head BN statistics over the real G rows only (G_pad is padded).
            gmask = (lax.broadcasted_iota(jnp.int32, (G_pad, 1), 0) < G).astype(f32)
            inv_g = 1.0 / G
            mu2 = jnp.sum(h2 * gmask, axis=0, keepdims=True) * inv_g
            var2 = jnp.maximum(
                jnp.sum(h2 * h2 * gmask, axis=0, keepdims=True) * inv_g - mu2 * mu2,
                0.0)
            h2n = jnp.maximum(
                (h2 - mu2) * lax.rsqrt(var2 + EPS) * g1_ref[...] + be1_ref[...], 0.0)
            out_ref[...] = (jnp.dot(h2n, wf2_ref[...], preferred_element_type=f32)
                            + bf2_ref[...])


# -------------------------------- wrapper --------------------------------
def tgnn_forward(x_pair, idx_pairs, params, num_atom_feats, dim_target,
                 tile_p=2048):
    f32 = jnp.float32
    P, Din = x_pair.shape
    G = int(idx_pairs.shape[0])
    A = num_atom_feats

    # Pad G to a multiple of 8 (padded graphs get count=0 -> zero mask rows).
    G_pad = _round_up(G, 8)
    counts_real = idx_pairs.astype(jnp.int32)
    starts_real = jnp.concatenate(
        [jnp.zeros((1,), jnp.int32), jnp.cumsum(counts_real)[:-1].astype(jnp.int32)])
    counts = jnp.zeros((G_pad, 1), jnp.int32).at[:G, 0].set(counts_real)
    starts = jnp.zeros((G_pad, 1), jnp.int32).at[:G, 0].set(starts_real)

    # Fused block-diagonal embedding weight: one x[P,2A+B] @ W[2A+B,320] matmul
    # replaces the three tiny-K atom/atom/bond matmuls and the 3-way wp1 split.
    w_emb = jnp.zeros((Din, 320), f32)
    w_emb = w_emb.at[:A, 0:128].set(params["wa"])
    w_emb = w_emb.at[A:2 * A, 128:256].set(params["wa"])
    w_emb = w_emb.at[2 * A:, 256:320].set(params["wb"])
    b_emb = jnp.concatenate([params["ba"], params["ba"], params["bb"]], axis=1)

    TP = _round_up(min(tile_p, _round_up(P, 8)), 8)
    NT = pl.cdiv(P, TP)
    has_partial = (P % TP) != 0

    cparams = pltpu.CompilerParams(
        dimension_semantics=("arbitrary", "arbitrary"),
        vmem_limit_bytes=32 * 1024 * 1024)

    flops = int(2 * 2 * P * (Din * 320 + 320 * 256)       # h_pre, both phases
                + 2 * P * G_pad * 256                     # segment mask matmul
                + 2 * G_pad * (256 * 128 + 128 * 128 + 128 * dim_target))
    bytes_accessed = int(4 * (2 * P * Din
                              + Din * 320 + 320 * 256 + 256 * 128 + 128 * 128
                              + 128 * dim_target
                              + G_pad * (2 + dim_target) + 8 * 320))

    call = pl.pallas_call(
        functools.partial(_tgnn_kernel, P, G, has_partial),
        grid=(2, NT),
        in_specs=[
            pl.BlockSpec((TP, Din), lambda ph, t: (t, 0)),          # x (streamed twice)
            pl.BlockSpec((G_pad, 1), lambda ph, t: (0, 0)),         # starts
            pl.BlockSpec((G_pad, 1), lambda ph, t: (0, 0)),         # counts
            pl.BlockSpec((Din, 320), lambda ph, t: (0, 0)),         # fused emb weight
            pl.BlockSpec((1, 320), lambda ph, t: (0, 0)),           # fused emb bias
            pl.BlockSpec((320, 256), lambda ph, t: (0, 0)),         # wp1
            pl.BlockSpec((1, 256), lambda ph, t: (0, 0)),           # bp1
            pl.BlockSpec((1, 256), lambda ph, t: (0, 0)),           # gp1
            pl.BlockSpec((1, 256), lambda ph, t: (0, 0)),           # bep1
            pl.BlockSpec((256, 128), lambda ph, t: (0, 0)),         # wp3
            pl.BlockSpec((1, 128), lambda ph, t: (0, 0)),           # bp3
            pl.BlockSpec((128, 128), lambda ph, t: (0, 0)),         # wf1
            pl.BlockSpec((1, 128), lambda ph, t: (0, 0)),           # bf1
            pl.BlockSpec((1, 128), lambda ph, t: (0, 0)),           # g1
            pl.BlockSpec((1, 128), lambda ph, t: (0, 0)),           # be1
            pl.BlockSpec((128, dim_target), lambda ph, t: (0, 0)),  # wf2
            pl.BlockSpec((1, dim_target), lambda ph, t: (0, 0)),    # bf2
        ],
        out_specs=pl.BlockSpec((G_pad, dim_target), lambda ph, t: (0, 0)),
        out_shape=jax.ShapeDtypeStruct((G_pad, dim_target), f32),
        scratch_shapes=[
            pltpu.VMEM((1, 256), f32),       # sum
            pltpu.VMEM((1, 256), f32),       # sumsq
            pltpu.VMEM((1, 256), f32),       # folded BN scale
            pltpu.VMEM((1, 256), f32),       # folded BN shift
            pltpu.VMEM((G_pad, 256), f32),   # per-graph accumulator
        ],
        compiler_params=cparams,
        cost_estimate=pl.CostEstimate(flops=flops, transcendentals=0,
                                      bytes_accessed=bytes_accessed),
    )
    out_pad = call(x_pair, starts, counts, w_emb, b_emb,
                   params["wp1"], params["bp1"], params["gp1"], params["bep1"],
                   params["wp3"], params["bp3"], params["wf1"], params["bf1"],
                   params["g1"], params["be1"], params["wf2"], params["bf2"])
    return out_pad[:G]


# --------------------------- plain-JAX reference ---------------------------
def tgnn_ref(x_pair, idx_pairs, params, A):
    relu = lambda v: jnp.maximum(v, 0.0)

    def bn(h, g, b):
        mu = jnp.mean(h, axis=0, keepdims=True)
        var = jnp.mean((h - mu) ** 2, axis=0, keepdims=True)
        return (h - mu) * lax.rsqrt(var + EPS) * g + b

    a1 = relu(x_pair[:, :A] @ params["wa"] + params["ba"])
    a2 = relu(x_pair[:, A:2 * A] @ params["wa"] + params["ba"])
    be = relu(x_pair[:, 2 * A:] @ params["wb"] + params["bb"])
    cat = jnp.concatenate([a1, a2, be], axis=1)
    h = relu(bn(cat @ params["wp1"] + params["bp1"], params["gp1"], params["bep1"]))
    hp = h @ params["wp3"] + params["bp3"]

    rows = []
    pos = 0
    for c in list(idx_pairs):
        c = int(c)
        rows.append(jnp.mean(hp[pos:pos + c, :], axis=0))
        pos += c
    hg = jnp.stack(rows, axis=0)

    h2 = relu(bn(hg @ params["wf1"] + params["bf1"], params["g1"], params["be1"]))
    return h2 @ params["wf2"] + params["bf2"]


# -------------------------------- params --------------------------------
def _linear(key, fan_in, fan_out):
    k = 1.0 / jnp.sqrt(jnp.float32(fan_in))
    kw, kb = jax.random.split(key)
    w = jax.random.uniform(kw, (fan_in, fan_out), jnp.float32, -k, k)
    b = jax.random.uniform(kb, (1, fan_out), jnp.float32, -k, k)
    return w, b


def init_params(key, num_atom_feats, num_bond_feats, dim_target):
    ks = jax.random.split(key, 6)
    wa, ba = _linear(ks[0], num_atom_feats, 128)
    wb, bb = _linear(ks[1], num_bond_feats, 64)
    wp1, bp1 = _linear(ks[2], 2 * 128 + 64, 256)
    wp3, bp3 = _linear(ks[3], 256, 128)
    wf1, bf1 = _linear(ks[4], 128, 128)
    wf2, bf2 = _linear(ks[5], 128, dim_target)
    # TODO(synk): self.attn (nn.Linear(128, 1)) is defined but never used in forward; omitted.
    return dict(
        wa=wa, ba=ba, wb=wb, bb=bb,
        wp1=wp1, bp1=bp1,
        gp1=jnp.ones((1, 256), jnp.float32), bep1=jnp.zeros((1, 256), jnp.float32),
        wp3=wp3, bp3=bp3,
        wf1=wf1, bf1=bf1,
        g1=jnp.ones((1, 128), jnp.float32), be1=jnp.zeros((1, 128), jnp.float32),
        wf2=wf2, bf2=bf2,
    )


if __name__ == "__main__":
    num_atom_feats = 16
    num_bond_feats = 8
    dim_target = 8

    key = jax.random.PRNGKey(0)
    kp, kx = jax.random.split(key)
    params = init_params(kp, num_atom_feats, num_bond_feats, dim_target)

    idx_pairs = jnp.array([3, 5, 4], dtype=jnp.int32)   # pairs per graph
    P = int(jnp.sum(idx_pairs))
    D_in = 2 * num_atom_feats + num_bond_feats
    x_pair = jax.random.normal(kx, (P, D_in), jnp.float32)

    ref = tgnn_ref(x_pair, idx_pairs, params, num_atom_feats)

    # tile_p=8 exercises the multi-tile + partial-tile path of the kernel.
    out_small = jax.block_until_ready(
        tgnn_forward(x_pair, idx_pairs, params, num_atom_feats, dim_target,
                     tile_p=8))
    # Production default tile size (single tile at this tiny P).
    out_big = jax.block_until_ready(
        tgnn_forward(x_pair, idx_pairs, params, num_atom_feats, dim_target))

    assert out_small.shape == (idx_pairs.shape[0], dim_target)
    assert out_big.shape == (idx_pairs.shape[0], dim_target)
    assert jnp.allclose(out_small, ref, rtol=1e-4, atol=1e-4), "mismatch (tile_p=8)"
    assert jnp.allclose(out_big, ref, rtol=1e-4, atol=1e-4), "mismatch (default tile)"
    print("KERNEL_OK")
</pallas_src>

<mosaic_0001>
module attributes {stable_mosaic.version = 11 : i64} {
  func.func @_tgnn_kernel(%arg0: i32, %arg1: i32, %arg2: memref<8x40xf32, #tpu.memory_space<vmem>>, %arg3: memref<8x1xi32, #tpu.memory_space<vmem>>, %arg4: memref<8x1xi32, #tpu.memory_space<vmem>>, %arg5: memref<40x320xf32, #tpu.memory_space<vmem>>, %arg6: memref<1x320xf32, #tpu.memory_space<vmem>>, %arg7: memref<320x256xf32, #tpu.memory_space<vmem>>, %arg8: memref<1x256xf32, #tpu.memory_space<vmem>>, %arg9: memref<1x256xf32, #tpu.memory_space<vmem>>, %arg10: memref<1x256xf32, #tpu.memory_space<vmem>>, %arg11: memref<256x128xf32, #tpu.memory_space<vmem>>, %arg12: memref<1x128xf32, #tpu.memory_space<vmem>>, %arg13: memref<128x128xf32, #tpu.memory_space<vmem>>, %arg14: memref<1x128xf32, #tpu.memory_space<vmem>>, %arg15: memref<1x128xf32, #tpu.memory_space<vmem>>, %arg16: memref<1x128xf32, #tpu.memory_space<vmem>>, %arg17: memref<128x8xf32, #tpu.memory_space<vmem>>, %arg18: memref<1x8xf32, #tpu.memory_space<vmem>>, %arg19: memref<8x8xf32, #tpu.memory_space<vmem>>, %arg20: memref<1x256xf32, #tpu.memory_space<vmem>>, %arg21: memref<1x256xf32, #tpu.memory_space<vmem>>, %arg22: memref<1x256xf32, #tpu.memory_space<vmem>>, %arg23: memref<1x256xf32, #tpu.memory_space<vmem>>, %arg24: memref<8x256xf32, #tpu.memory_space<vmem>>) attributes {dimension_semantics = [#tpu.dimension_semantics<arbitrary>, #tpu.dimension_semantics<arbitrary>], iteration_bounds = array<i64: 2, 2>, scalar_prefetch = 0 : i64, scratch_operands = 5 : i64, tpu.core_type = #tpu.core_type<tc>, window_params = [{transform_indices = @transform_0, window_bounds = array<i64: 8, 40>}, {pipeline_mode = #tpu.pipeline_mode<synchronous>, transform_indices = @transform_1, window_bounds = array<i64: 8, 1>}, {pipeline_mode = #tpu.pipeline_mode<synchronous>, transform_indices = @transform_2, window_bounds = array<i64: 8, 1>}, {pipeline_mode = #tpu.pipeline_mode<synchronous>, transform_indices = @transform_3, window_bounds = array<i64: 40, 320>}, {pipeline_mode = #tpu.pipeline_mode<synchronous>, transform_indices = @transform_4, window_bounds = array<i64: 1, 320>}, {pipeline_mode = #tpu.pipeline_mode<synchronous>, transform_indices = @transform_5, window_bounds = array<i64: 320, 256>}, {pipeline_mode = #tpu.pipeline_mode<synchronous>, transform_indices = @transform_6, window_bounds = array<i64: 1, 256>}, {pipeline_mode = #tpu.pipeline_mode<synchronous>, transform_indices = @transform_7, window_bounds = array<i64: 1, 256>}, {pipeline_mode = #tpu.pipeline_mode<synchronous>, transform_indices = @transform_8, window_bounds = array<i64: 1, 256>}, {pipeline_mode = #tpu.pipeline_mode<synchronous>, transform_indices = @transform_9, window_bounds = array<i64: 256, 128>}, {pipeline_mode = #tpu.pipeline_mode<synchronous>, transform_indices = @transform_10, window_bounds = array<i64: 1, 128>}, {pipeline_mode = #tpu.pipeline_mode<synchronous>, transform_indices = @transform_11, window_bounds = array<i64: 128, 128>}, {pipeline_mode = #tpu.pipeline_mode<synchronous>, transform_indices = @transform_12, window_bounds = array<i64: 1, 128>}, {pipeline_mode = #tpu.pipeline_mode<synchronous>, transform_indices = @transform_13, window_bounds = array<i64: 1, 128>}, {pipeline_mode = #tpu.pipeline_mode<synchronous>, transform_indices = @transform_14, window_bounds = array<i64: 1, 128>}, {pipeline_mode = #tpu.pipeline_mode<synchronous>, transform_indices = @transform_15, window_bounds = array<i64: 128, 8>}, {pipeline_mode = #tpu.pipeline_mode<synchronous>, transform_indices = @transform_16, window_bounds = array<i64: 1, 8>}, {pipeline_mode = #tpu.pipeline_mode<synchronous>, transform_indices = @transform_17, window_bounds = array<i64: 8, 8>}]} {
    %c0 = arith.constant 0 : index
    %c0_0 = arith.constant 0 : index
    %0 = vector.load %arg2[%c0, %c0_0] : memref<8x40xf32, #tpu.memory_space<vmem>>, vector<8x40xf32>
    %c0_1 = arith.constant 0 : index
    %c0_2 = arith.constant 0 : index
    %1 = vector.load %arg5[%c0_1, %c0_2] : memref<40x320xf32, #tpu.memory_space<vmem>>, vector<40x320xf32>
    %cst = arith.constant dense<0.000000e+00> : vector<8x320xf32>
    %2 = tpu.matmul %0, %1, %cst {dimension_numbers = #tpu.dot_dimension_numbers<[1], [0], [0], [1], [0, 0, 1, 1], [], []>} : vector<8x40xf32>, vector<40x320xf32>, vector<8x320xf32> -> vector<8x320xf32>
    %c0_3 = arith.constant 0 : index
    %c0_4 = arith.constant 0 : index
    %3 = vector.load %arg6[%c0_3, %c0_4] : memref<1x320xf32, #tpu.memory_space<vmem>>, vector<1x320xf32>
    %4 = vector.broadcast %3 : vector<1x320xf32> to vector<8x320xf32>
    %5 = arith.addf %2, %4 : vector<8x320xf32>
    %cst_5 = arith.constant 0.000000e+00 : f32
    %6 = vector.broadcast %cst_5 : f32 to vector<8x320xf32>
    %7 = arith.maximumf %5, %6 : vector<8x320xf32>
    %c0_6 = arith.constant 0 : index
    %c0_7 = arith.constant 0 : index
    %8 = vector.load %arg7[%c0_6, %c0_7] : memref<320x256xf32, #tpu.memory_space<vmem>>, vector<320x256xf32>
    %cst_8 = arith.constant dense<0.000000e+00> : vector<8x256xf32>
    %9 = tpu.matmul %7, %8, %cst_8 {dimension_numbers = #tpu.dot_dimension_numbers<[1], [0], [0], [1], [0, 0, 1, 1], [], []>} : vector<8x320xf32>, vector<320x256xf32>, vector<8x256xf32> -> vector<8x256xf32>
    %c0_9 = arith.constant 0 : index
    %c0_10 = arith.constant 0 : index
    %10 = vector.load %arg8[%c0_9, %c0_10] : memref<1x256xf32, #tpu.memory_space<vmem>>, vector<1x256xf32>
    %11 = vector.broadcast %10 : vector<1x256xf32> to vector<8x256xf32>
    %12 = arith.addf %9, %11 : vector<8x256xf32>
    %c0_i32 = arith.constant 0 : i32
    %13 = arith.cmpi eq, %arg0, %c0_i32 : i32
    %14 = arith.extui %13 : i1 to i32
    %c0_i32_11 = arith.constant 0 : i32
    %15 = arith.cmpi ne, %14, %c0_i32_11 : i32
    scf.if %15 {
      %c0_i32_13 = arith.constant 0 : i32
      %19 = arith.cmpi eq, %arg1, %c0_i32_13 : i32
      %20 = arith.extui %19 : i1 to i32
      %c0_i32_14 = arith.constant 0 : i32
      %21 = arith.cmpi ne, %20, %c0_i32_14 : i32
      scf.if %21 {
        %cst_19 = arith.constant 0.000000e+00 : f32
        %28 = vector.broadcast %cst_19 : f32 to vector<1x256xf32>
        %c0_20 = arith.constant 0 : index
        %c0_21 = arith.constant 0 : index
        %29 = vector.load %arg20[%c0_20, %c0_21] : memref<1x256xf32, #tpu.memory_space<vmem>>, vector<1x256xf32>
        tpu.vector_store %arg20[%c0_20, %c0_21], %28 {strides = array<i32>} : memref<1x256xf32, #tpu.memory_space<vmem>>, vector<1x256xf32>,
        %cst_22 = arith.constant 0.000000e+00 : f32
        %30 = vector.broadcast %cst_22 : f32 to vector<1x256xf32>
        %c0_23 = arith.constant 0 : index
        %c0_24 = arith.constant 0 : index
        %31 = vector.load %arg21[%c0_23, %c0_24] : memref<1x256xf32, #tpu.memory_space<vmem>>, vector<1x256xf32>
        tpu.vector_store %arg21[%c0_23, %c0_24], %30 {strides = array<i32>} : memref<1x256xf32, #tpu.memory_space<vmem>>, vector<1x256xf32>,
      } else {
      }
      %c1_i32_15 = arith.constant 1 : i32
      %22 = arith.cmpi slt, %arg1, %c1_i32_15 : i32
      %23 = arith.extui %22 : i1 to i32
      %c0_i32_16 = arith.constant 0 : i32
      %24 = arith.cmpi ne, %23, %c0_i32_16 : i32
      scf.if %24 {
        %c0_19 = arith.constant 0 : index
        %c0_20 = arith.constant 0 : index
        %28 = vector.load %arg20[%c0_19, %c0_20] : memref<1x256xf32, #tpu.memory_space<vmem>>, vector<1x256xf32>
        %cst_21 = arith.constant dense<0.000000e+00> : vector<256xf32>
        %29 = vector.multi_reduction <add>, %12, %cst_21 [0] : vector<8x256xf32> to vector<256xf32>
        %30 = vector.shape_cast %29 : vector<256xf32> to vector<1x256xf32>
        %31 = arith.addf %28, %30 : vector<1x256xf32>
        %c0_22 = arith.constant 0 : index
        %c0_23 = arith.constant 0 : index
        %32 = vector.load %arg20[%c0_22, %c0_23] : memref<1x256xf32, #tpu.memory_space<vmem>>, vector<1x256xf32>
        tpu.vector_store %arg20[%c0_22, %c0_23], %31 {strides = array<i32>} : memref<1x256xf32, #tpu.memory_space<vmem>>, vector<1x256xf32>,
        %c0_24 = arith.constant 0 : index
        %c0_25 = arith.constant 0 : index
        %33 = vector.load %arg21[%c0_24, %c0_25] : memref<1x256xf32, #tpu.memory_space<vmem>>, vector<1x256xf32>
        %34 = arith.mulf %12, %12 : vector<8x256xf32>
        %cst_26 = arith.constant dense<0.000000e+00> : vector<256xf32>
        %35 = vector.multi_reduction <add>, %34, %cst_26 [0] : vector<8x256xf32> to vector<256xf32>
        %36 = vector.shape_cast %35 : vector<256xf32> to vector<1x256xf32>
        %37 = arith.addf %33, %36 : vector<1x256xf32>
        %c0_27 = arith.constant 0 : index
        %c0_28 = arith.constant 0 : index
        %38 = vector.load %arg21[%c0_27, %c0_28] : memref<1x256xf32, #tpu.memory_space<vmem>>, vector<1x256xf32>
        tpu.vector_store %arg21[%c0_27, %c0_28], %37 {strides = array<i32>} : memref<1x256xf32, #tpu.memory_space<vmem>>, vector<1x256xf32>,
      } else {
      }
      %c1_i32_17 = arith.constant 1 : i32
      %25 = arith.cmpi eq, %arg1, %c1_i32_17 : i32
      %26 = arith.extui %25 : i1 to i32
      %c0_i32_18 = arith.constant 0 : i32
      %27 = arith.cmpi ne, %26, %c0_i32_18 : i32
      scf.if %27 {
        %c8_i32 = arith.constant 8 : i32
        %28 = arith.muli %arg1, %c8_i32 : i32
        %29 = tpu.iota {dimensions = array<i32: 0>} : vector<8x1xi32>
        %30 = vector.broadcast %28 : i32 to vector<8x1xi32>
        %31 = arith.addi %30, %29 : vector<8x1xi32>
        %c12_i32 = arith.constant 12 : i32
        %32 = vector.broadcast %c12_i32 : i32 to vector<8x1xi32>
        %33 = arith.cmpi slt, %31, %32 : vector<8x1xi32>
        %cst_19 = arith.constant 0.000000e+00 : f32
        %34 = vector.shape_cast %33 : vector<8x1xi1> to vector<8x1xi1>
        %35 = vector.broadcast %34 : vector<8x1xi1> to vector<8x256xi1>
        %36 = vector.broadcast %cst_19 : f32 to vector<8x256xf32>
        %37 = arith.select %35, %12, %36 : vector<8x256xi1>, vector<8x256xf32>
        %c0_20 = arith.constant 0 : index
        %c0_21 = arith.constant 0 : index
        %38 = vector.load %arg20[%c0_20, %c0_21] : memref<1x256xf32, #tpu.memory_space<vmem>>, vector<1x256xf32>
        %cst_22 = arith.constant dense<0.000000e+00> : vector<256xf32>
        %39 = vector.multi_reduction <add>, %37, %cst_22 [0] : vector<8x256xf32> to vector<256xf32>
        %40 = vector.shape_cast %39 : vector<256xf32> to vector<1x256xf32>
        %41 = arith.addf %38, %40 : vector<1x256xf32>
        %c0_23 = arith.constant 0 : index
        %c0_24 = arith.constant 0 : index
        %42 = vector.load %arg20[%c0_23, %c0_24] : memref<1x256xf32, #tpu.memory_space<vmem>>, vector<1x256xf32>
        tpu.vector_store %arg20[%c0_23, %c0_24], %41 {strides = array<i32>} : memref<1x256xf32, #tpu.memory_space<vmem>>, vector<1x256xf32>,
        %c0_25 = arith.constant 0 : index
        %c0_26 = arith.constant 0 : index
        %43 = vector.load %arg21[%c0_25, %c0_26] : memref<1x256xf32, #tpu.memory_space<vmem>>, vector<1x256xf32>
        %44 = arith.mulf %37, %37 : vector<8x256xf32>
        %cst_27 = arith.constant dense<0.000000e+00> : vector<256xf32>
        %45 = vector.multi_reduction <add>, %44, %cst_27 [0] : vector<8x256xf32> to vector<256xf32>
        %46 = vector.shape_cast %45 : vector<256xf32> to vector<1x256xf32>
        %47 = arith.addf %43, %46 : vector<1x256xf32>
        %c0_28 = arith.constant 0 : index
        %c0_29 = arith.constant 0 : index
        %48 = vector.load %arg21[%c0_28, %c0_29] : memref<1x256xf32, #tpu.memory_space<vmem>>, vector<1x256xf32>
        tpu.vector_store %arg21[%c0_28, %c0_29], %47 {strides = array<i32>} : memref<1x256xf32, #tpu.memory_space<vmem>>, vector<1x256xf32>,
      } else {
      }
    } else {
    }
    %c1_i32 = arith.constant 1 : i32
    %16 = arith.cmpi eq, %arg0, %c1_i32 : i32
    %17 = arith.extui %16 : i1 to i32
    %c0_i32_12 = arith.constant 0 : i32
    %18 = arith.cmpi ne, %17, %c0_i32_12 : i32
    scf.if %18 {
      %c0_i32_13 = arith.constant 0 : i32
      %19 = arith.cmpi eq, %arg1, %c0_i32_13 : i32
      %20 = arith.extui %19 : i1 to i32
      %c0_i32_14 = arith.constant 0 : i32
      %21 = arith.cmpi ne, %20, %c0_i32_14 : i32
      scf.if %21 {
        %c0_30 = arith.constant 0 : index
        %c0_31 = arith.constant 0 : index
        %41 = vector.load %arg20[%c0_30, %c0_31] : memref<1x256xf32, #tpu.memory_space<vmem>>, vector<1x256xf32>
        %cst_32 = arith.constant 0.0833333358 : f32
        %42 = vector.broadcast %cst_32 : f32 to vector<1x256xf32>
        %43 = arith.mulf %41, %42 : vector<1x256xf32>
        %c0_33 = arith.constant 0 : index
        %c0_34 = arith.constant 0 : index
        %44 = vector.load %arg21[%c0_33, %c0_34] : memref<1x256xf32, #tpu.memory_space<vmem>>, vector<1x256xf32>
        %cst_35 = arith.constant 0.0833333358 : f32
        %45 = vector.broadcast %cst_35 : f32 to vector<1x256xf32>
        %46 = arith.mulf %44, %45 : vector<1x256xf32>
        %47 = arith.mulf %43, %43 : vector<1x256xf32>
        %48 = arith.subf %46, %47 : vector<1x256xf32>
        %cst_36 = arith.constant 0.000000e+00 : f32
        %49 = vector.broadcast %cst_36 : f32 to vector<1x256xf32>
        %50 = arith.maximumf %48, %49 : vector<1x256xf32>
        %c0_37 = arith.constant 0 : index
        %c0_38 = arith.constant 0 : index
        %51 = vector.load %arg9[%c0_37, %c0_38] : memref<1x256xf32, #tpu.memory_space<vmem>>, vector<1x256xf32>
        %cst_39 = arith.constant 9.99999974E-6 : f32
        %52 = vector.broadcast %cst_39 : f32 to vector<1x256xf32>
        %53 = arith.addf %50, %52 : vector<1x256xf32>
        %54 = math.rsqrt %53 : vector<1x256xf32>
        %55 = arith.mulf %51, %54 : vector<1x256xf32>
        %c0_40 = arith.constant 0 : index
        %c0_41 = arith.constant 0 : index
        %56 = vector.load %arg22[%c0_40, %c0_41] : memref<1x256xf32, #tpu.memory_space<vmem>>, vector<1x256xf32>
        tpu.vector_store %arg22[%c0_40, %c0_41], %55 {strides = array<i32>} : memref<1x256xf32, #tpu.memory_space<vmem>>, vector<1x256xf32>,
        %c0_42 = arith.constant 0 : index
        %c0_43 = arith.constant 0 : index
        %57 = vector.load %arg10[%c0_42, %c0_43] : memref<1x256xf32, #tpu.memory_space<vmem>>, vector<1x256xf32>
        %58 = arith.mulf %43, %55 : vector<1x256xf32>
        %59 = arith.subf %57, %58 : vector<1x256xf32>
        %c0_44 = arith.constant 0 : index
        %c0_45 = arith.constant 0 : index
        %60 = vector.load %arg23[%c0_44, %c0_45] : memref<1x256xf32, #tpu.memory_space<vmem>>, vector<1x256xf32>
        tpu.vector_store %arg23[%c0_44, %c0_45], %59 {strides = array<i32>} : memref<1x256xf32, #tpu.memory_space<vmem>>, vector<1x256xf32>,
        %cst_46 = arith.constant 0.000000e+00 : f32
        %61 = vector.broadcast %cst_46 : f32 to vector<8x256xf32>
        %c0_47 = arith.constant 0 : index
        %c0_48 = arith.constant 0 : index
        %62 = vector.load %arg24[%c0_47, %c0_48] : memref<8x256xf32, #tpu.memory_space<vmem>>, vector<8x256xf32>
        tpu.vector_store %arg24[%c0_47, %c0_48], %61 {strides = array<i32>} : memref<8x256xf32, #tpu.memory_space<vmem>>, vector<8x256xf32>,
      } else {
      }
      %c0_15 = arith.constant 0 : index
      %c0_16 = arith.constant 0 : index
      %22 = vector.load %arg22[%c0_15, %c0_16] : memref<1x256xf32, #tpu.memory_space<vmem>>, vector<1x256xf32>
      %23 = vector.broadcast %22 : vector<1x256xf32> to vector<8x256xf32>
      %24 = arith.mulf %12, %23 : vector<8x256xf32>
      %c0_17 = arith.constant 0 : index
      %c0_18 = arith.constant 0 : index
      %25 = vector.load %arg23[%c0_17, %c0_18] : memref<1x256xf32, #tpu.memory_space<vmem>>, vector<1x256xf32>
      %26 = vector.broadcast %25 : vector<1x256xf32> to vector<8x256xf32>
      %27 = arith.addf %24, %26 : vector<8x256xf32>
      %cst_19 = arith.constant 0.000000e+00 : f32
      %28 = vector.broadcast %cst_19 : f32 to vector<8x256xf32>
      %29 = arith.maximumf %27, %28 : vector<8x256xf32>
      %c0_20 = arith.constant 0 : index
      %c0_21 = arith.constant 0 : index
      %30 = vector.load %arg3[%c0_20, %c0_21] : memref<8x1xi32, #tpu.memory_space<vmem>>, vector<8x1xi32>
      %c0_22 = arith.constant 0 : index
      %c0_23 = arith.constant 0 : index
      %31 = vector.load %arg4[%c0_22, %c0_23] : memref<8x1xi32, #tpu.memory_space<vmem>>, vector<8x1xi32>
      %c1_i32_24 = arith.constant 1 : i32
      %32 = arith.cmpi slt, %arg1, %c1_i32_24 : i32
      %33 = arith.extui %32 : i1 to i32
      %c0_i32_25 = arith.constant 0 : i32
      %34 = arith.cmpi ne, %33, %c0_i32_25 : i32
      scf.if %34 {
        %c8_i32 = arith.constant 8 : i32
        %41 = arith.muli %arg1, %c8_i32 : i32
        %42 = tpu.iota {dimensions = array<i32: 1>} : vector<8x8xi32>
        %43 = vector.broadcast %41 : i32 to vector<8x8xi32>
        %44 = arith.addi %43, %42 : vector<8x8xi32>
        %45 = vector.broadcast %30 : vector<8x1xi32> to vector<8x8xi32>
        %46 = arith.cmpi sge, %44, %45 : vector<8x8xi32>
        %47 = arith.addi %30, %31 : vector<8x1xi32>
        %48 = vector.broadcast %47 : vector<8x1xi32> to vector<8x8xi32>
        %49 = arith.cmpi slt, %44, %48 : vector<8x8xi32>
        %50 = arith.andi %46, %49 : vector<8x8xi1>
        %51 = arith.extui %50 : vector<8x8xi1> to vector<8x8xi32>
        %52 = arith.sitofp %51 : vector<8x8xi32> to vector<8x8xf32>
        %c0_30 = arith.constant 0 : index
        %c0_31 = arith.constant 0 : index
        %53 = vector.load %arg24[%c0_30, %c0_31] : memref<8x256xf32, #tpu.memory_space<vmem>>, vector<8x256xf32>
        %cst_32 = arith.constant dense<0.000000e+00> : vector<8x256xf32>
        %54 = tpu.matmul %52, %29, %cst_32 {dimension_numbers = #tpu.dot_dimension_numbers<[1], [0], [0], [1], [0, 0, 1, 1], [], []>} : vector<8x8xf32>, vector<8x256xf32>, vector<8x256xf32> -> vector<8x256xf32>
        %55 = arith.addf %53, %54 : vector<8x256xf32>
        %c0_33 = arith.constant 0 : index
        %c0_34 = arith.constant 0 : index
        %56 = vector.load %arg24[%c0_33, %c0_34] : memref<8x256xf32, #tpu.memory_space<vmem>>, vector<8x256xf32>
        tpu.vector_store %arg24[%c0_33, %c0_34], %55 {strides = array<i32>} : memref<8x256xf32, #tpu.memory_space<vmem>>, vector<8x256xf32>,
      } else {
      }
      %c1_i32_26 = arith.constant 1 : i32
      %35 = arith.cmpi eq, %arg1, %c1_i32_26 : i32
      %36 = arith.extui %35 : i1 to i32
      %c0_i32_27 = arith.constant 0 : i32
      %37 = arith.cmpi ne, %36, %c0_i32_27 : i32
      scf.if %37 {
        %c8_i32 = arith.constant 8 : i32
        %41 = arith.muli %arg1, %c8_i32 : i32
        %42 = tpu.iota {dimensions = array<i32: 0>} : vector<8x1xi32>
        %43 = vector.broadcast %41 : i32 to vector<8x1xi32>
        %44 = arith.addi %43, %42 : vector<8x1xi32>
        %c12_i32 = arith.constant 12 : i32
        %45 = vector.broadcast %c12_i32 : i32 to vector<8x1xi32>
        %46 = arith.cmpi slt, %44, %45 : vector<8x1xi32>
        %cst_30 = arith.constant 0.000000e+00 : f32
        %47 = vector.shape_cast %46 : vector<8x1xi1> to vector<8x1xi1>
        %48 = vector.broadcast %47 : vector<8x1xi1> to vector<8x256xi1>
        %49 = vector.broadcast %cst_30 : f32 to vector<8x256xf32>
        %50 = arith.select %48, %29, %49 : vector<8x256xi1>, vector<8x256xf32>
        %c8_i32_31 = arith.constant 8 : i32
        %51 = arith.muli %arg1, %c8_i32_31 : i32
        %52 = tpu.iota {dimensions = array<i32: 1>} : vector<8x8xi32>
        %53 = vector.broadcast %51 : i32 to vector<8x8xi32>
        %54 = arith.addi %53, %52 : vector<8x8xi32>
        %55 = vector.broadcast %30 : vector<8x1xi32> to vector<8x8xi32>
        %56 = arith.cmpi sge, %54, %55 : vector<8x8xi32>
        %57 = arith.addi %30, %31 : vector<8x1xi32>
        %58 = vector.broadcast %57 : vector<8x1xi32> to vector<8x8xi32>
        %59 = arith.cmpi slt, %54, %58 : vector<8x8xi32>
        %60 = arith.andi %56, %59 : vector<8x8xi1>
        %61 = arith.extui %60 : vector<8x8xi1> to vector<8x8xi32>
        %62 = arith.sitofp %61 : vector<8x8xi32> to vector<8x8xf32>
        %c0_32 = arith.constant 0 : index
        %c0_33 = arith.constant 0 : index
        %63 = vector.load %arg24[%c0_32, %c0_33] : memref<8x256xf32, #tpu.memory_space<vmem>>, vector<8x256xf32>
        %cst_34 = arith.constant dense<0.000000e+00> : vector<8x256xf32>
        %64 = tpu.matmul %62, %50, %cst_34 {dimension_numbers = #tpu.dot_dimension_numbers<[1], [0], [0], [1], [0, 0, 1, 1], [], []>} : vector<8x8xf32>, vector<8x256xf32>, vector<8x256xf32> -> vector<8x256xf32>
        %65 = arith.addf %63, %64 : vector<8x256xf32>
        %c0_35 = arith.constant 0 : index
        %c0_36 = arith.constant 0 : index
        %66 = vector.load %arg24[%c0_35, %c0_36] : memref<8x256xf32, #tpu.memory_space<vmem>>, vector<8x256xf32>
        tpu.vector_store %arg24[%c0_35, %c0_36], %65 {strides = array<i32>} : memref<8x256xf32, #tpu.memory_space<vmem>>, vector<8x256xf32>,
      } else {
      }
      %c1_i32_28 = arith.constant 1 : i32
      %38 = arith.cmpi eq, %arg1, %c1_i32_28 : i32
      %39 = arith.extui %38 : i1 to i32
      %c0_i32_29 = arith.constant 0 : i32
      %40 = arith.cmpi ne, %39, %c0_i32_29 : i32
      scf.if %40 {
        %41 = arith.sitofp %31 : vector<8x1xi32> to vector<8x1xf32>
        %cst_30 = arith.constant 1.000000e+00 : f32
        %42 = vector.broadcast %cst_30 : f32 to vector<8x1xf32>
        %43 = arith.maximumf %41, %42 : vector<8x1xf32>
        %cst_31 = arith.constant 1.000000e+00 : f32
        %44 = vector.broadcast %cst_31 : f32 to vector<8x1xf32>
        %45 = arith.divf %44, %43 : vector<8x1xf32>
        %c0_32 = arith.constant 0 : index
        %c0_33 = arith.constant 0 : index
        %46 = vector.load %arg24[%c0_32, %c0_33] : memref<8x256xf32, #tpu.memory_space<vmem>>, vector<8x256xf32>
        %47 = vector.broadcast %45 : vector<8x1xf32> to vector<8x256xf32>
        %48 = arith.mulf %46, %47 : vector<8x256xf32>
        %c0_34 = arith.constant 0 : index
        %c0_35 = arith.constant 0 : index
        %49 = vector.load %arg11[%c0_34, %c0_35] : memref<256x128xf32, #tpu.memory_space<vmem>>, vector<256x128xf32>
        %cst_36 = arith.constant dense<0.000000e+00> : vector<8x128xf32>
        %50 = tpu.matmul %48, %49, %cst_36 {dimension_numbers = #tpu.dot_dimension_numbers<[1], [0], [0], [1], [0, 0, 1, 1], [], []>} : vector<8x256xf32>, vector<256x128xf32>, vector<8x128xf32> -> vector<8x128xf32>
        %c0_37 = arith.constant 0 : index
        %c0_38 = arith.constant 0 : index
        %51 = vector.load %arg12[%c0_37, %c0_38] : memref<1x128xf32, #tpu.memory_space<vmem>>, vector<1x128xf32>
        %52 = vector.broadcast %51 : vector<1x128xf32> to vector<8x128xf32>
        %53 = arith.addf %50, %52 : vector<8x128xf32>
        %c0_39 = arith.constant 0 : index
        %c0_40 = arith.constant 0 : index
        %54 = vector.load %arg13[%c0_39, %c0_40] : memref<128x128xf32, #tpu.memory_space<vmem>>, vector<128x128xf32>
        %cst_41 = arith.constant dense<0.000000e+00> : vector<8x128xf32>
        %55 = tpu.matmul %53, %54, %cst_41 {dimension_numbers = #tpu.dot_dimension_numbers<[1], [0], [0], [1], [0, 0, 1, 1], [], []>} : vector<8x128xf32>, vector<128x128xf32>, vector<8x128xf32> -> vector<8x128xf32>
        %c0_42 = arith.constant 0 : index
        %c0_43 = arith.constant 0 : index
        %56 = vector.load %arg14[%c0_42, %c0_43] : memref<1x128xf32, #tpu.memory_space<vmem>>, vector<1x128xf32>
        %57 = vector.broadcast %56 : vector<1x128xf32> to vector<8x128xf32>
        %58 = arith.addf %55, %57 : vector<8x128xf32>
        %59 = tpu.iota {dimensions = array<i32: 0>} : vector<8x1xi32>
        %c3_i32 = arith.constant 3 : i32
        %60 = vector.broadcast %c3_i32 : i32 to vector<8x1xi32>
        %61 = arith.cmpi slt, %59, %60 : vector<8x1xi32>
        %62 = arith.extui %61 : vector<8x1xi1> to vector<8x1xi32>
        %63 = arith.sitofp %62 : vector<8x1xi32> to vector<8x1xf32>
        %64 = vector.broadcast %63 : vector<8x1xf32> to vector<8x128xf32>
        %65 = arith.mulf %58, %64 : vector<8x128xf32>
        %cst_44 = arith.constant dense<0.000000e+00> : vector<128xf32>
        %66 = vector.multi_reduction <add>, %65, %cst_44 [0] : vector<8x128xf32> to vector<128xf32>
        %67 = vector.shape_cast %66 : vector<128xf32> to vector<1x128xf32>
        %cst_45 = arith.constant 0.333333343 : f32
        %68 = vector.broadcast %cst_45 : f32 to vector<1x128xf32>
        %69 = arith.mulf %67, %68 : vector<1x128xf32>
        %70 = arith.mulf %58, %58 : vector<8x128xf32>
        %71 = vector.broadcast %63 : vector<8x1xf32> to vector<8x128xf32>
        %72 = arith.mulf %70, %71 : vector<8x128xf32>
        %cst_46 = arith.constant dense<0.000000e+00> : vector<128xf32>
        %73 = vector.multi_reduction <add>, %72, %cst_46 [0] : vector<8x128xf32> to vector<128xf32>
        %74 = vector.shape_cast %73 : vector<128xf32> to vector<1x128xf32>
        %cst_47 = arith.constant 0.333333343 : f32
        %75 = vector.broadcast %cst_47 : f32 to vector<1x128xf32>
        %76 = arith.mulf %74, %75 : vector<1x128xf32>
        %77 = arith.mulf %69, %69 : vector<1x128xf32>
        %78 = arith.subf %76, %77 : vector<1x128xf32>
        %cst_48 = arith.constant 0.000000e+00 : f32
        %79 = vector.broadcast %cst_48 : f32 to vector<1x128xf32>
        %80 = arith.maximumf %78, %79 : vector<1x128xf32>
        %81 = vector.broadcast %69 : vector<1x128xf32> to vector<8x128xf32>
        %82 = arith.subf %58, %81 : vector<8x128xf32>
        %cst_49 = arith.constant 9.99999974E-6 : f32
        %83 = vector.broadcast %cst_49 : f32 to vector<1x128xf32>
        %84 = arith.addf %80, %83 : vector<1x128xf32>
        %85 = math.rsqrt %84 : vector<1x128xf32>
        %86 = vector.broadcast %85 : vector<1x128xf32> to vector<8x128xf32>
        %87 = arith.mulf %82, %86 : vector<8x128xf32>
        %c0_50 = arith.constant 0 : index
        %c0_51 = arith.constant 0 : index
        %88 = vector.load %arg15[%c0_50, %c0_51] : memref<1x128xf32, #tpu.memory_space<vmem>>, vector<1x128xf32>
        %89 = vector.broadcast %88 : vector<1x128xf32> to vector<8x128xf32>
        %90 = arith.mulf %87, %89 : vector<8x128xf32>
        %c0_52 = arith.constant 0 : index
        %c0_53 = arith.constant 0 : index
        %91 = vector.load %arg16[%c0_52, %c0_53] : memref<1x128xf32, #tpu.memory_space<vmem>>, vector<1x128xf32>
        %92 = vector.broadcast %91 : vector<1x128xf32> to vector<8x128xf32>
        %93 = arith.addf %90, %92 : vector<8x128xf32>
        %cst_54 = arith.constant 0.000000e+00 : f32
        %94 = vector.broadcast %cst_54 : f32 to vector<8x128xf32>
        %95 = arith.maximumf %93, %94 : vector<8x128xf32>
        %c0_55 = arith.constant 0 : index
        %c0_56 = arith.constant 0 : index
        %96 = vector.load %arg17[%c0_55, %c0_56] : memref<128x8xf32, #tpu.memory_space<vmem>>, vector<128x8xf32>
        %cst_57 = arith.constant dense<0.000000e+00> : vector<8x8xf32>
        %97 = tpu.matmul %95, %96, %cst_57 {dimension_numbers = #tpu.dot_dimension_numbers<[1], [0], [0], [1], [0, 0, 1, 1], [], []>} : vector<8x128xf32>, vector<128x8xf32>, vector<8x8xf32> -> vector<8x8xf32>
        %c0_58 = arith.constant 0 : index
        %c0_59 = arith.constant 0 : index
        %98 = vector.load %arg18[%c0_58, %c0_59] : memref<1x8xf32, #tpu.memory_space<vmem>>, vector<1x8xf32>
        %99 = vector.broadcast %98 : vector<1x8xf32> to vector<8x8xf32>
        %100 = arith.addf %97, %99 : vector<8x8xf32>
        %c0_60 = arith.constant 0 : index
        %c0_61 = arith.constant 0 : index
        %101 = vector.load %arg19[%c0_60, %c0_61] : memref<8x8xf32, #tpu.memory_space<vmem>>, vector<8x8xf32>
        tpu.vector_store %arg19[%c0_60, %c0_61], %100 {strides = array<i32>} : memref<8x8xf32, #tpu.memory_space<vmem>>, vector<8x8xf32>,
      } else {
      }
    } else {
    }
    return
  }
  func.func @transform_0(%arg0: i32, %arg1: i32) -> (i32, i32) {
    %c0_i32 = arith.constant 0 : i32
    %c0_i32_0 = arith.constant 0 : i32
    return %arg1, %c0_i32 : i32, i32
  }
  func.func @transform_1(%arg0: i32, %arg1: i32) -> (i32, i32) {
    %c0_i32 = arith.constant 0 : i32
    %c0_i32_0 = arith.constant 0 : i32
    %c0_i32_1 = arith.constant 0 : i32
    return %c0_i32, %c0_i32_0 : i32, i32
  }
  func.func @transform_2(%arg0: i32, %arg1: i32) -> (i32, i32) {
    %c0_i32 = arith.constant 0 : i32
    %c0_i32_0 = arith.constant 0 : i32
    %c0_i32_1 = arith.constant 0 : i32
    return %c0_i32, %c0_i32_0 : i32, i32
  }
  func.func @transform_3(%arg0: i32, %arg1: i32) -> (i32, i32) {
    %c0_i32 = arith.constant 0 : i32
    %c0_i32_0 = arith.constant 0 : i32
    %c0_i32_1 = arith.constant 0 : i32
    return %c0_i32, %c0_i32_0 : i32, i32
  }
  func.func @transform_4(%arg0: i32, %arg1: i32) -> (i32, i32) {
    %c0_i32 = arith.constant 0 : i32
    %c0_i32_0 = arith.constant 0 : i32
    %c0_i32_1 = arith.constant 0 : i32
    return %c0_i32, %c0_i32_0 : i32, i32
  }
  func.func @transform_5(%arg0: i32, %arg1: i32) -> (i32, i32) {
    %c0_i32 = arith.constant 0 : i32
    %c0_i32_0 = arith.constant 0 : i32
    %c0_i32_1 = arith.constant 0 : i32
    return %c0_i32, %c0_i32_0 : i32, i32
  }
  func.func @transform_6(%arg0: i32, %arg1: i32) -> (i32, i32) {
    %c0_i32 = arith.constant 0 : i32
    %c0_i32_0 = arith.constant 0 : i32
    %c0_i32_1 = arith.constant 0 : i32
    return %c0_i32, %c0_i32_0 : i32, i32
  }
  func.func @transform_7(%arg0: i32, %arg1: i32) -> (i32, i32) {
    %c0_i32 = arith.constant 0 : i32
    %c0_i32_0 = arith.constant 0 : i32
    %c0_i32_1 = arith.constant 0 : i32
    return %c0_i32, %c0_i32_0 : i32, i32
  }
  func.func @transform_8(%arg0: i32, %arg1: i32) -> (i32, i32) {
    %c0_i32 = arith.constant 0 : i32
    %c0_i32_0 = arith.constant 0 : i32
    %c0_i32_1 = arith.constant 0 : i32
    return %c0_i32, %c0_i32_0 : i32, i32
  }
  func.func @transform_9(%arg0: i32, %arg1: i32) -> (i32, i32) {
    %c0_i32 = arith.constant 0 : i32
    %c0_i32_0 = arith.constant 0 : i32
    %c0_i32_1 = arith.constant 0 : i32
    return %c0_i32, %c0_i32_0 : i32, i32
  }
  func.func @transform_10(%arg0: i32, %arg1: i32) -> (i32, i32) {
    %c0_i32 = arith.constant 0 : i32
    %c0_i32_0 = arith.constant 0 : i32
    %c0_i32_1 = arith.constant 0 : i32
    return %c0_i32, %c0_i32_0 : i32, i32
  }
  func.func @transform_11(%arg0: i32, %arg1: i32) -> (i32, i32) {
    %c0_i32 = arith.constant 0 : i32
    %c0_i32_0 = arith.constant 0 : i32
    %c0_i32_1 = arith.constant 0 : i32
    return %c0_i32, %c0_i32_0 : i32, i32
  }
  func.func @transform_12(%arg0: i32, %arg1: i32) -> (i32, i32) {
    %c0_i32 = arith.constant 0 : i32
    %c0_i32_0 = arith.constant 0 : i32
    %c0_i32_1 = arith.constant 0 : i32
    return %c0_i32, %c0_i32_0 : i32, i32
  }
  func.func @transform_13(%arg0: i32, %arg1: i32) -> (i32, i32) {
    %c0_i32 = arith.constant 0 : i32
    %c0_i32_0 = arith.constant 0 : i32
    %c0_i32_1 = arith.constant 0 : i32
    return %c0_i32, %c0_i32_0 : i32, i32
  }
  func.func @transform_14(%arg0: i32, %arg1: i32) -> (i32, i32) {
    %c0_i32 = arith.constant 0 : i32
    %c0_i32_0 = arith.constant 0 : i32
    %c0_i32_1 = arith.constant 0 : i32
    return %c0_i32, %c0_i32_0 : i32, i32
  }
  func.func @transform_15(%arg0: i32, %arg1: i32) -> (i32, i32) {
    %c0_i32 = arith.constant 0 : i32
    %c0_i32_0 = arith.constant 0 : i32
    %c0_i32_1 = arith.constant 0 : i32
    return %c0_i32, %c0_i32_0 : i32, i32
  }
  func.func @transform_16(%arg0: i32, %arg1: i32) -> (i32, i32) {
    %c0_i32 = arith.constant 0 : i32
    %c0_i32_0 = arith.constant 0 : i32
    %c0_i32_1 = arith.constant 0 : i32
    return %c0_i32, %c0_i32_0 : i32, i32
  }
  func.func @transform_17(%arg0: i32, %arg1: i32) -> (i32, i32) {
    %c0_i32 = arith.constant 0 : i32
    %c0_i32_0 = arith.constant 0 : i32
    %c0_i32_1 = arith.constant 0 : i32
    return %c0_i32, %c0_i32_0 : i32, i32
  }
}

</mosaic_0001>

<llo_original>
// kernel: tpu_custom_call.1
$region0: #{tpu_custom_call.1}
  #allocation0 [shape = 'u32[]', space=smem, size = 0x4, offset = 0x4, fixed_abs, tag = 'smem constant byte address 0x4 - core index']
  #allocation1 [shape = 'u32[144,128]{1,0:T(1,128)}', space=vmem, size = 0x12000, scoped, tag = 'internal scratch']
  #allocation2 [shape = 'f32[1,256]{1,0:T(1,128)}', space=vmem, size = 0x400, scoped, tag = 'scratch operand']
  #allocation3 [shape = 'f32[1,256]{1,0:T(1,128)}', space=vmem, size = 0x400, scoped, tag = 'scratch operand']
  #allocation4 [shape = 'f32[1,256]{1,0:T(1,128)}', space=vmem, size = 0x400, scoped, tag = 'scratch operand']
  #allocation5 [shape = 'f32[1,256]{1,0:T(1,128)}', space=vmem, size = 0x400, scoped, tag = 'scratch operand']
  #allocation6 [shape = 'f32[8,256]{1,0:T(8,128)}', space=vmem, size = 0x2000, scoped, tag = 'scratch operand']
  %s0 = inlined_call_operand.vmem [shape: f32[12,40], index: 0, kind: input, shape index: {}]
  %s1 = inlined_call_operand.vmem [shape: s32[8,1], index: 1, kind: input, shape index: {}]
  %s2 = inlined_call_operand.vmem [shape: s32[8,1], index: 2, kind: input, shape index: {}]
  %s3 = inlined_call_operand.hbm [shape: f32[40,320], index: 3, kind: input, shape index: {}]
  %s4 = inlined_call_operand.vmem [shape: f32[1,320], index: 4, kind: input, shape index: {}]
  %s5 = inlined_call_operand.hbm [shape: f32[320,256], index: 5, kind: input, shape index: {}]
  %s6 = inlined_call_operand.vmem [shape: f32[1,256], index: 6, kind: input, shape index: {}]
  %s7 = inlined_call_operand.vmem [shape: f32[1,256], index: 7, kind: input, shape index: {}]
  %s8 = inlined_call_operand.vmem [shape: f32[1,256], index: 8, kind: input, shape index: {}]
  %s9 = inlined_call_operand.hbm [shape: f32[256,128], index: 9, kind: input, shape index: {}]
  %s10 = inlined_call_operand.vmem [shape: f32[1,128], index: 10, kind: input, shape index: {}]
  %s11 = inlined_call_operand.vmem [shape: f32[128,128], index: 11, kind: input, shape index: {}]
  %s12 = inlined_call_operand.vmem [shape: f32[1,128], index: 12, kind: input, shape index: {}]
  %s13 = inlined_call_operand.vmem [shape: f32[1,128], index: 13, kind: input, shape index: {}]
  %s14 = inlined_call_operand.vmem [shape: f32[1,128], index: 14, kind: input, shape index: {}]
  %s15 = inlined_call_operand.vmem [shape: f32[128,8], index: 15, kind: input, shape index: {}]
  %s16 = inlined_call_operand.vmem [shape: f32[1,8], index: 16, kind: input, shape index: {}]
  %s17 = inlined_call_operand.hbm [shape: f32[8,8], index: 17, kind: output, shape index: {}]
  %s18 = sld [smem:[#allocation0]]
  $region145: #{tpu_custom_call.1} parent=0
    _
  %s20 = ssub.s32 1, %s18
  %s21 = scalar_select 0, %s20, %s18
  $region1: #{tpu_custom_call.1} parent=0
    #allocation7 [shape = 'u8[61440]{0}', space=vmem, size = 0xf000, scoped, tag = 'input window, operand 3, single buffered']
    #allocation8 [shape = 's32[2]{0}', space=sflag, size = 0x8, scoped, tag = 'scoped memory for tpu_custom_call.1']
    #allocation9 [shape = 's32[2]{0}', space=sflag, size = 0x8, scoped, tag = 'scoped memory for tpu_custom_call.1']
    #allocation10 [shape = 'u8[327680]{0}', space=vmem, size = 0x50000, scoped, tag = 'input window, operand 5, single buffered']
    #allocation11 [shape = 's32[1]{0}', space=sflag, size = 0x4, scoped, tag = 'scoped memory for tpu_custom_call.1']
    #allocation12 [shape = 'u8[131072]{0}', space=vmem, size = 0x20000, scoped, tag = 'input window, operand 9, single buffered']
    #allocation13 [shape = 'u8[4096]{0}', space=vmem, size = 0x1000, scoped, tag = 'output window, operand 0, single buffered']
    %22 = vsyncpa [#allocation8], 0
    %23 = vsyncpa [#allocation11], 0
    %24 = vsyncpa [#allocation9], 0
    loop: start=0, step=1, limit=6
    $region2: #{tpu_custom_call.1} parent=1 // loop_pre_header
      _
    $region3: #{tpu_custom_call.1} parent=1 // loop_header
      %s26 = sphi 0, %s30
      %p27 = scmp.ge.s32.totalorder %s26, 6
      %s33 = sphi 0, %s45
      %s34 = sphi 0, %s41
      %s35 = sphi 0, %s33
      %s36 = sphi 0, %s34
      %s37 = sphi 0, %s35
      %s38 = sphi 0, %s36
      %s48 = sphi 0, %s50
      %s51 = sphi 0, %s48
      %s52 = sphi 0, %s51
      %s68 = sphi 0, %s52
      %s72 = sphi 0, %s72
      %s74 = sphi 0, %s72
      %s75 = sphi 0, %s74
      %s89 = sphi 0, %s75
      %s93 = sphi 0, %s93
      %s95 = sphi 0, %s93
      %s96 = sphi 0, %s95
      %s110 = sphi 0, %s96
      %s114 = sphi 0, %s114
      %s116 = sphi 0, %s114
      %s117 = sphi 0, %s116
      %s131 = sphi 0, %s117
      %s135 = sphi 0, %s135
      %s137 = sphi 0, %s135
      %s138 = sphi 0, %s137
      %s152 = sphi 0, %s138
      %s156 = sphi 0, %s156
      %s158 = sphi 0, %s156
      %s159 = sphi 0, %s158
      %s173 = sphi 0, %s159
      %s177 = sphi 0, %s177
      %s179 = sphi 0, %s177
      %s180 = sphi 0, %s179
      %s194 = sphi 0, %s180
      %s198 = sphi 0, %s198
      %s200 = sphi 0, %s198
      %s201 = sphi 0, %s200
      %s215 = sphi 0, %s201
      %s219 = sphi 0, %s219
      %s221 = sphi 0, %s219
      %s222 = sphi 0, %s221
      %s236 = sphi 0, %s222
      %s240 = sphi 0, %s240
      %s242 = sphi 0, %s240
      %s243 = sphi 0, %s242
      %s257 = sphi 0, %s243
      %s261 = sphi 0, %s261
      %s263 = sphi 0, %s261
      %s264 = sphi 0, %s263
      %s278 = sphi 0, %s264
      %s282 = sphi 0, %s282
      %s284 = sphi 0, %s282
      %s285 = sphi 0, %s284
      %s299 = sphi 0, %s285
      %s303 = sphi 0, %s303
      %s305 = sphi 0, %s303
      %s306 = sphi 0, %s305
      %s320 = sphi 0, %s306
      %s324 = sphi 0, %s324
      %s326 = sphi 0, %s324
      %s327 = sphi 0, %s326
      %s341 = sphi 0, %s327
      %s345 = sphi 0, %s345
      %s347 = sphi 0, %s345
      %s348 = sphi 0, %s347
      %s362 = sphi 0, %s348
      %s366 = sphi 0, %s366
      %s368 = sphi 0, %s366
      %s369 = sphi 0, %s368
      %s383 = sphi 0, %s369
      %s387 = sphi 0, %s387
      %s389 = sphi 0, %s387
      %s390 = sphi 0, %s389
      %s404 = sphi 0, %s390
      %s408 = sphi 0, %s408
      %s410 = sphi 0, %s408
      %s411 = sphi 0, %s410
      %s425 = sphi 0, %s411
    $region4: #{tpu_custom_call.1} parent=1 // loop_header_branch
      %29 = sbr.rel (%p27) target = $region8
    $region5: #{tpu_custom_call.1} parent=1 // loop_body
      %s31 = ssub.s32 %s26, 1
      %s32 = ssub.s32 %s26, 2
      %s39 = sadd.s32 1, %s34
      %p40 = scmp.ge.s32.totalorder %s39, 2
      %s41 = scalar_select %p40, 0, %s39
      %s42 = sadd.s32 1, %s33
      %s43 = scalar_select %p40, %s42, %s33
      %p44 = scmp.ge.s32.totalorder %s43, 2
      %s45 = scalar_select %p44, 0, %s43
      %s46 = ssub.s32 %s34, %s41
      %p47 = scmp.eq.s32.totalorder %s46, 0
      %s49 = sadd.s32 %s48, 1
      %s50 = scalar_select %p47, %s48, %s49
      %p53 = pneg %p47
      %p54 = scmp.eq.s32.totalorder %s26, 3
      %p55 = por %p53, %p54
      %p56 = scmp.ne.s32.totalorder %s48, %s51
      %p57 = scmp.eq.s32.totalorder %s26, 0
      %p58 = por %p56, %p57
      %p59 = scmp.ne.s32.totalorder %s48, %s51
      %p60 = scmp.eq.s32.totalorder %s31, 3
      %p61 = por %p59, %p60
      %p62 = scmp.ne.s32.totalorder %s51, %s52
      %p63 = scmp.eq.s32.totalorder %s31, 0
      %p64 = por %p62, %p63
      %p65 = scmp.ne.s32.totalorder %s51, %s52
      %p66 = scmp.eq.s32.totalorder %s32, 3
      %p67 = por %p65, %p66
      %p69 = scmp.ne.s32.totalorder %s52, %s68
      %p70 = scmp.eq.s32.totalorder %s32, 0
      %p71 = por %p69, %p70
      %s73 = sadd.s32 %s72, 1
      %p76 = scmp.eq.s32.totalorder %s26, 3
      %p77 = scmp.ne.s32.totalorder %s72, %s74
      %p78 = scmp.eq.s32.totalorder %s26, 0
      %p79 = por %p77, %p78
      %p80 = scmp.ne.s32.totalorder %s72, %s74
      %p81 = scmp.eq.s32.totalorder %s31, 3
      %p82 = por %p80, %p81
      %p83 = scmp.ne.s32.totalorder %s74, %s75
      %p84 = scmp.eq.s32.totalorder %s31, 0
      %p85 = por %p83, %p84
      %p86 = scmp.ne.s32.totalorder %s74, %s75
      %p87 = scmp.eq.s32.totalorder %s32, 3
      %p88 = por %p86, %p87
      %p90 = scmp.ne.s32.totalorder %s75, %s89
      %p91 = scmp.eq.s32.totalorder %s32, 0
      %p92 = por %p90, %p91
      %s94 = sadd.s32 %s93, 1
      %p97 = scmp.eq.s32.totalorder %s26, 3
      %p98 = scmp.ne.s32.totalorder %s93, %s95
      %p99 = scmp.eq.s32.totalorder %s26, 0
      %p100 = por %p98, %p99
      %p101 = scmp.ne.s32.totalorder %s93, %s95
      %p102 = scmp.eq.s32.totalorder %s31, 3
      %p103 = por %p101, %p102
      %p104 = scmp.ne.s32.totalorder %s95, %s96
      %p105 = scmp.eq.s32.totalorder %s31, 0
      %p106 = por %p104, %p105
      %p107 = scmp.ne.s32.totalorder %s95, %s96
      %p108 = scmp.eq.s32.totalorder %s32, 3
      %p109 = por %p107, %p108
      %p111 = scmp.ne.s32.totalorder %s96, %s110
      %p112 = scmp.eq.s32.totalorder %s32, 0
      %p113 = por %p111, %p112
      %s115 = sadd.s32 %s114, 1
      %p118 = scmp.eq.s32.totalorder %s26, 3
      %p119 = scmp.ne.s32.totalorder %s114, %s116
      %p120 = scmp.eq.s32.totalorder %s26, 0
      %p121 = por %p119, %p120
      %p122 = scmp.ne.s32.totalorder %s114, %s116
      %p123 = scmp.eq.s32.totalorder %s31, 3
      %p124 = por %p122, %p123
      %p125 = scmp.ne.s32.totalorder %s116, %s117
      %p126 = scmp.eq.s32.totalorder %s31, 0
      %p127 = por %p125, %p126
      %p128 = scmp.ne.s32.totalorder %s116, %s117
      %p129 = scmp.eq.s32.totalorder %s32, 3
      %p130 = por %p128, %p129
      %p132 = scmp.ne.s32.totalorder %s117, %s131
      %p133 = scmp.eq.s32.totalorder %s32, 0
      %p134 = por %p132, %p133
      %s136 = sadd.s32 %s135, 1
      %p139 = scmp.eq.s32.totalorder %s26, 3
      %p140 = scmp.ne.s32.totalorder %s135, %s137
      %p141 = scmp.eq.s32.totalorder %s26, 0
      %p142 = por %p140, %p141
      %p143 = scmp.ne.s32.totalorder %s135, %s137
      %p144 = scmp.eq.s32.totalorder %s31, 3
      %p145 = por %p143, %p144
      %p146 = scmp.ne.s32.totalorder %s137, %s138
      %p147 = scmp.eq.s32.totalorder %s31, 0
      %p148 = por %p146, %p147
      %p149 = scmp.ne.s32.totalorder %s137, %s138
      %p150 = scmp.eq.s32.totalorder %s32, 3
      %p151 = por %p149, %p150
      %p153 = scmp.ne.s32.totalorder %s138, %s152
      %p154 = scmp.eq.s32.totalorder %s32, 0
      %p155 = por %p153, %p154
      %s157 = sadd.s32 %s156, 1
      %p160 = scmp.eq.s32.totalorder %s26, 3
      %p161 = scmp.ne.s32.totalorder %s156, %s158
      %p162 = scmp.eq.s32.totalorder %s26, 0
      %p163 = por %p161, %p162
      %p164 = scmp.ne.s32.totalorder %s156, %s158
      %p165 = scmp.eq.s32.totalorder %s31, 3
      %p166 = por %p164, %p165
      %p167 = scmp.ne.s32.totalorder %s158, %s159
      %p168 = scmp.eq.s32.totalorder %s31, 0
      %p169 = por %p167, %p168
      %p170 = scmp.ne.s32.totalorder %s158, %s159
      %p171 = scmp.eq.s32.totalorder %s32, 3
      %p172 = por %p170, %p171
      %p174 = scmp.ne.s32.totalorder %s159, %s173
      %p175 = scmp.eq.s32.totalorder %s32, 0
      %p176 = por %p174, %p175
      %s178 = sadd.s32 %s177, 1
      %p181 = scmp.eq.s32.totalorder %s26, 3
      %p182 = scmp.ne.s32.totalorder %s177, %s179
      %p183 = scmp.eq.s32.totalorder %s26, 0
      %p184 = por %p182, %p183
      %p185 = scmp.ne.s32.totalorder %s177, %s179
      %p186 = scmp.eq.s32.totalorder %s31, 3
      %p187 = por %p185, %p186
      %p188 = scmp.ne.s32.totalorder %s179, %s180
      %p189 = scmp.eq.s32.totalorder %s31, 0
      %p190 = por %p188, %p189
      %p191 = scmp.ne.s32.totalorder %s179, %s180
      %p192 = scmp.eq.s32.totalorder %s32, 3
      %p193 = por %p191, %p192
      %p195 = scmp.ne.s32.totalorder %s180, %s194
      %p196 = scmp.eq.s32.totalorder %s32, 0
      %p197 = por %p195, %p196
      %s199 = sadd.s32 %s198, 1
      %p202 = scmp.eq.s32.totalorder %s26, 3
      %p203 = scmp.ne.s32.totalorder %s198, %s200
      %p204 = scmp.eq.s32.totalorder %s26, 0
      %p205 = por %p203, %p204
      %p206 = scmp.ne.s32.totalorder %s198, %s200
      %p207 = scmp.eq.s32.totalorder %s31, 3
      %p208 = por %p206, %p207
      %p209 = scmp.ne.s32.totalorder %s200, %s201
      %p210 = scmp.eq.s32.totalorder %s31, 0
      %p211 = por %p209, %p210
      %p212 = scmp.ne.s32.totalorder %s200, %s201
      %p213 = scmp.eq.s32.totalorder %s32, 3
      %p214 = por %p212, %p213
      %p216 = scmp.ne.s32.totalorder %s201, %s215
      %p217 = scmp.eq.s32.totalorder %s32, 0
      %p218 = por %p216, %p217
      %s220 = sadd.s32 %s219, 1
      %p223 = scmp.eq.s32.totalorder %s26, 3
      %p224 = scmp.ne.s32.totalorder %s219, %s221
      %p225 = scmp.eq.s32.totalorder %s26, 0
      %p226 = por %p224, %p225
      %p227 = scmp.ne.s32.totalorder %s219, %s221
      %p228 = scmp.eq.s32.totalorder %s31, 3
      %p229 = por %p227, %p228
      %p230 = scmp.ne.s32.totalorder %s221, %s222
      %p231 = scmp.eq.s32.totalorder %s31, 0
      %p232 = por %p230, %p231
      %p233 = scmp.ne.s32.totalorder %s221, %s222
      %p234 = scmp.eq.s32.totalorder %s32, 3
      %p235 = por %p233, %p234
      %p237 = scmp.ne.s32.totalorder %s222, %s236
      %p238 = scmp.eq.s32.totalorder %s32, 0
      %p239 = por %p237, %p238
      %s241 = sadd.s32 %s240, 1
      %p244 = scmp.eq.s32.totalorder %s26, 3
      %p245 = scmp.ne.s32.totalorder %s240, %s242
      %p246 = scmp.eq.s32.totalorder %s26, 0
      %p247 = por %p245, %p246
      %p248 = scmp.ne.s32.totalorder %s240, %s242
      %p249 = scmp.eq.s32.totalorder %s31, 3
      %p250 = por %p248, %p249
      %p251 = scmp.ne.s32.totalorder %s242, %s243
      %p252 = scmp.eq.s32.totalorder %s31, 0
      %p253 = por %p251, %p252
      %p254 = scmp.ne.s32.totalorder %s242, %s243
      %p255 = scmp.eq.s32.totalorder %s32, 3
      %p256 = por %p254, %p255
      %p258 = scmp.ne.s32.totalorder %s243, %s257
      %p259 = scmp.eq.s32.totalorder %s32, 0
      %p260 = por %p258, %p259
      %s262 = sadd.s32 %s261, 1
      %p265 = scmp.eq.s32.totalorder %s26, 3
      %p266 = scmp.ne.s32.totalorder %s261, %s263
      %p267 = scmp.eq.s32.totalorder %s26, 0
      %p268 = por %p266, %p267
      %p269 = scmp.ne.s32.totalorder %s261, %s263
      %p270 = scmp.eq.s32.totalorder %s31, 3
      %p271 = por %p269, %p270
      %p272 = scmp.ne.s32.totalorder %s263, %s264
      %p273 = scmp.eq.s32.totalorder %s31, 0
      %p274 = por %p272, %p273
      %p275 = scmp.ne.s32.totalorder %s263, %s264
      %p276 = scmp.eq.s32.totalorder %s32, 3
      %p277 = por %p275, %p276
      %p279 = scmp.ne.s32.totalorder %s264, %s278
      %p280 = scmp.eq.s32.totalorder %s32, 0
      %p281 = por %p279, %p280
      %s283 = sadd.s32 %s282, 1
      %p286 = scmp.eq.s32.totalorder %s26, 3
      %p287 = scmp.ne.s32.totalorder %s282, %s284
      %p288 = scmp.eq.s32.totalorder %s26, 0
      %p289 = por %p287, %p288
      %p290 = scmp.ne.s32.totalorder %s282, %s284
      %p291 = scmp.eq.s32.totalorder %s31, 3
      %p292 = por %p290, %p291
      %p293 = scmp.ne.s32.totalorder %s284, %s285
      %p294 = scmp.eq.s32.totalorder %s31, 0
      %p295 = por %p293, %p294
      %p296 = scmp.ne.s32.totalorder %s284, %s285
      %p297 = scmp.eq.s32.totalorder %s32, 3
      %p298 = por %p296, %p297
      %p300 = scmp.ne.s32.totalorder %s285, %s299
      %p301 = scmp.eq.s32.totalorder %s32, 0
      %p302 = por %p300, %p301
      %s304 = sadd.s32 %s303, 1
      %p307 = scmp.eq.s32.totalorder %s26, 3
      %p308 = scmp.ne.s32.totalorder %s303, %s305
      %p309 = scmp.eq.s32.totalorder %s26, 0
      %p310 = por %p308, %p309
      %p311 = scmp.ne.s32.totalorder %s303, %s305
      %p312 = scmp.eq.s32.totalorder %s31, 3
      %p313 = por %p311, %p312
      %p314 = scmp.ne.s32.totalorder %s305, %s306
      %p315 = scmp.eq.s32.totalorder %s31, 0
      %p316 = por %p314, %p315
      %p317 = scmp.ne.s32.totalorder %s305, %s306
      %p318 = scmp.eq.s32.totalorder %s32, 3
      %p319 = por %p317, %p318
      %p321 = scmp.ne.s32.totalorder %s306, %s320
      %p322 = scmp.eq.s32.totalorder %s32, 0
      %p323 = por %p321, %p322
      %s325 = sadd.s32 %s324, 1
      %p328 = scmp.eq.s32.totalorder %s26, 3
      %p329 = scmp.ne.s32.totalorder %s324, %s326
      %p330 = scmp.eq.s32.totalorder %s26, 0
      %p331 = por %p329, %p330
      %p332 = scmp.ne.s32.totalorder %s324, %s326
      %p333 = scmp.eq.s32.totalorder %s31, 3
      %p334 = por %p332, %p333
      %p335 = scmp.ne.s32.totalorder %s326, %s327
      %p336 = scmp.eq.s32.totalorder %s31, 0
      %p337 = por %p335, %p336
      %p338 = scmp.ne.s32.totalorder %s326, %s327
      %p339 = scmp.eq.s32.totalorder %s32, 3
      %p340 = por %p338, %p339
      %p342 = scmp.ne.s32.totalorder %s327, %s341
      %p343 = scmp.eq.s32.totalorder %s32, 0
      %p344 = por %p342, %p343
      %s346 = sadd.s32 %s345, 1
      %p349 = scmp.eq.s32.totalorder %s26, 3
      %p350 = scmp.ne.s32.totalorder %s345, %s347
      %p351 = scmp.eq.s32.totalorder %s26, 0
      %p352 = por %p350, %p351
      %p353 = scmp.ne.s32.totalorder %s345, %s347
      %p354 = scmp.eq.s32.totalorder %s31, 3
      %p355 = por %p353, %p354
      %p356 = scmp.ne.s32.totalorder %s347, %s348
      %p357 = scmp.eq.s32.totalorder %s31, 0
      %p358 = por %p356, %p357
      %p359 = scmp.ne.s32.totalorder %s347, %s348
      %p360 = scmp.eq.s32.totalorder %s32, 3
      %p361 = por %p359, %p360
      %p363 = scmp.ne.s32.totalorder %s348, %s362
      %p364 = scmp.eq.s32.totalorder %s32, 0
      %p365 = por %p363, %p364
      %s367 = sadd.s32 %s366, 1
      %p370 = scmp.eq.s32.totalorder %s26, 3
      %p371 = scmp.ne.s32.totalorder %s366, %s368
      %p372 = scmp.eq.s32.totalorder %s26, 0
      %p373 = por %p371, %p372
      %p374 = scmp.ne.s32.totalorder %s366, %s368
      %p375 = scmp.eq.s32.totalorder %s31, 3
      %p376 = por %p374, %p375
      %p377 = scmp.ne.s32.totalorder %s368, %s369
      %p378 = scmp.eq.s32.totalorder %s31, 0
      %p379 = por %p377, %p378
      %p380 = scmp.ne.s32.totalorder %s368, %s369
      %p381 = scmp.eq.s32.totalorder %s32, 3
      %p382 = por %p380, %p381
      %p384 = scmp.ne.s32.totalorder %s369, %s383
      %p385 = scmp.eq.s32.totalorder %s32, 0
      %p386 = por %p384, %p385
      %s388 = sadd.s32 %s387, 1
      %p391 = scmp.eq.s32.totalorder %s26, 3
      %p392 = scmp.ne.s32.totalorder %s387, %s389
      %p393 = scmp.eq.s32.totalorder %s26, 0
      %p394 = por %p392, %p393
      %p395 = scmp.ne.s32.totalorder %s387, %s389
      %p396 = scmp.eq.s32.totalorder %s31, 3
      %p397 = por %p395, %p396
      %p398 = scmp.ne.s32.totalorder %s389, %s390
      %p399 = scmp.eq.s32.totalorder %s31, 0
      %p400 = por %p398, %p399
      %p401 = scmp.ne.s32.totalorder %s389, %s390
      %p402 = scmp.eq.s32.totalorder %s32, 3
      %p403 = por %p401, %p402
      %p405 = scmp.ne.s32.totalorder %s390, %s404
      %p406 = scmp.eq.s32.totalorder %s32, 0
      %p407 = por %p405, %p406
      %s409 = sadd.s32 %s408, 1
      %p412 = scmp.eq.s32.totalorder %s26, 3
      %p413 = scmp.ne.s32.totalorder %s408, %s410
      %p414 = scmp.eq.s32.totalorder %s26, 0
      %p415 = por %p413, %p414
      %p416 = scmp.ne.s32.totalorder %s408, %s410
      %p417 = scmp.eq.s32.totalorder %s31, 3
      %p418 = por %p416, %p417
      %p419 = scmp.ne.s32.totalorder %s410, %s411
      %p420 = scmp.eq.s32.totalorder %s31, 0
      %p421 = por %p419, %p420
      %p422 = scmp.ne.s32.totalorder %s410, %s411
      %p423 = scmp.eq.s32.totalorder %s32, 3
      %p424 = por %p422, %p423
      %p426 = scmp.ne.s32.totalorder %s411, %s425
      %p427 = scmp.eq.s32.totalorder %s32, 0
      %p428 = por %p426, %p427
      %p429 = scmp.le.s32.totalorder 1, %s26
      %p430 = scmp.lt.s32.totalorder %s26, 5
      %p431 = pnand %p429, %p430
      %p432 = pneg %p431
      // Predicated region
      $region9: #{tpu_custom_call.1} parent=5 // pred_check
        _
      $region10: #{tpu_custom_call.1} parent=5 // pred_check_branch
        %434 = sbr.rel (%p431) target = $region12
      $region11: #{tpu_custom_call.1} parent=5 // pred_region
        %s435 = ssub.s32 %s26, 1
        // Predicated region
        $region13: #{tpu_custom_call.1} parent=11 // pred_check
          %p436 = pneg %p85
        $region14: #{tpu_custom_call.1} parent=11 // pred_check_branch
          %438 = sbr.rel (%p436) target = $region16
        $region15: #{tpu_custom_call.1} parent=11 // pred_region
          _
        $region16: #{tpu_custom_call.1} parent=11 // pred_fallthru
          _
        // Predicated region
        $region17: #{tpu_custom_call.1} parent=11 // pred_check
          %p439 = pneg %p106
        $region18: #{tpu_custom_call.1} parent=11 // pred_check_branch
          %441 = sbr.rel (%p439) target = $region20
        $region19: #{tpu_custom_call.1} parent=11 // pred_region
          _
        $region20: #{tpu_custom_call.1} parent=11 // pred_fallthru
          _
        // Predicated region
        $region21: #{tpu_custom_call.1} parent=11 // pred_check
          %p442 = pneg %p127
        $region22: #{tpu_custom_call.1} parent=11 // pred_check_branch
          %444 = sbr.rel (%p442) target = $region24
        $region23: #{tpu_custom_call.1} parent=11 // pred_region
          %s446 = ssub.s32 1920, 1920
          %447 = vsyncadd [#allocation8], %s446
          %s448 = sshll.u32 [#allocation7], 4
          %s449 = int_to_ptr.vmem [resolvable:$true] %s448
          %454 = dma.hbm_to_vmem [thread:$0]  %s3, 1920, %s449, [#allocation8], 384, 384, 24
        $region24: #{tpu_custom_call.1} parent=11 // pred_fallthru
          _
        // Predicated region
        $region25: #{tpu_custom_call.1} parent=11 // pred_check
          %p455 = pneg %p148
        $region26: #{tpu_custom_call.1} parent=11 // pred_check_branch
          %457 = sbr.rel (%p455) target = $region28
        $region27: #{tpu_custom_call.1} parent=11 // pred_region
          _
        $region28: #{tpu_custom_call.1} parent=11 // pred_fallthru
          _
        // Predicated region
        $region29: #{tpu_custom_call.1} parent=11 // pred_check
          %p458 = pneg %p169
        $region30: #{tpu_custom_call.1} parent=11 // pred_check_branch
          %460 = sbr.rel (%p458) target = $region32
        $region31: #{tpu_custom_call.1} parent=11 // pred_region
          %s462 = ssub.s32 10240, 10240
          %463 = vsyncadd [#allocation11], %s462
          %s464 = sshll.u32 [#allocation10], 4
          %s465 = int_to_ptr.vmem [resolvable:$true] %s464
          %470 = dma.hbm_to_vmem [thread:$0]  %s5, 10240, %s465, [#allocation11], 256, 256, 16
        $region32: #{tpu_custom_call.1} parent=11 // pred_fallthru
          _
        // Predicated region
        $region33: #{tpu_custom_call.1} parent=11 // pred_check
          %p471 = pneg %p190
        $region34: #{tpu_custom_call.1} parent=11 // pred_check_branch
          %473 = sbr.rel (%p471) target = $region36
        $region35: #{tpu_custom_call.1} parent=11 // pred_region
          _
        $region36: #{tpu_custom_call.1} parent=11 // pred_fallthru
          _
        // Predicated region
        $region37: #{tpu_custom_call.1} parent=11 // pred_check
          %p474 = pneg %p211
        $region38: #{tpu_custom_call.1} parent=11 // pred_check_branch
          %476 = sbr.rel (%p474) target = $region40
        $region39: #{tpu_custom_call.1} parent=11 // pred_region
          _
        $region40: #{tpu_custom_call.1} parent=11 // pred_fallthru
          _
        // Predicated region
        $region41: #{tpu_custom_call.1} parent=11 // pred_check
          %p477 = pneg %p232
        $region42: #{tpu_custom_call.1} parent=11 // pred_check_branch
          %479 = sbr.rel (%p477) target = $region44
        $region43: #{tpu_custom_call.1} parent=11 // pred_region
          _
        $region44: #{tpu_custom_call.1} parent=11 // pred_fallthru
          _
        // Predicated region
        $region45: #{tpu_custom_call.1} parent=11 // pred_check
          %p480 = pneg %p253
        $region46: #{tpu_custom_call.1} parent=11 // pred_check_branch
          %482 = sbr.rel (%p480) target = $region48
        $region47: #{tpu_custom_call.1} parent=11 // pred_region
          %s484 = ssub.s32 4096, 4096
          %485 = vsyncadd [#allocation11], %s484
          %s486 = sshll.u32 [#allocation12], 4
          %s487 = int_to_ptr.vmem [resolvable:$true] %s486
          %492 = dma.hbm_to_vmem [thread:$0]  %s9, 4096, %s487, [#allocation11], 128, 128, 8
        $region48: #{tpu_custom_call.1} parent=11 // pred_fallthru
          _
        // Predicated region
        $region49: #{tpu_custom_call.1} parent=11 // pred_check
          %p493 = pneg %p274
        $region50: #{tpu_custom_call.1} parent=11 // pred_check_branch
          %495 = sbr.rel (%p493) target = $region52
        $region51: #{tpu_custom_call.1} parent=11 // pred_region
          _
        $region52: #{tpu_custom_call.1} parent=11 // pred_fallthru
          _
        // Predicated region
        $region53: #{tpu_custom_call.1} parent=11 // pred_check
          %p496 = pneg %p295
        $region54: #{tpu_custom_call.1} parent=11 // pred_check_branch
          %498 = sbr.rel (%p496) target = $region56
        $region55: #{tpu_custom_call.1} parent=11 // pred_region
          _
        $region56: #{tpu_custom_call.1} parent=11 // pred_fallthru
          _
        // Predicated region
        $region57: #{tpu_custom_call.1} parent=11 // pred_check
          %p499 = pneg %p316
        $region58: #{tpu_custom_call.1} parent=11 // pred_check_branch
          %501 = sbr.rel (%p499) target = $region60
        $region59: #{tpu_custom_call.1} parent=11 // pred_region
          _
        $region60: #{tpu_custom_call.1} parent=11 // pred_fallthru
          _
        // Predicated region
        $region61: #{tpu_custom_call.1} parent=11 // pred_check
          %p502 = pneg %p337
        $region62: #{tpu_custom_call.1} parent=11 // pred_check_branch
          %504 = sbr.rel (%p502) target = $region64
        $region63: #{tpu_custom_call.1} parent=11 // pred_region
          _
        $region64: #{tpu_custom_call.1} parent=11 // pred_fallthru
          _
        // Predicated region
        $region65: #{tpu_custom_call.1} parent=11 // pred_check
          %p505 = pneg %p358
        $region66: #{tpu_custom_call.1} parent=11 // pred_check_branch
          %507 = sbr.rel (%p505) target = $region68
        $region67: #{tpu_custom_call.1} parent=11 // pred_region
          _
        $region68: #{tpu_custom_call.1} parent=11 // pred_fallthru
          _
        // Predicated region
        $region69: #{tpu_custom_call.1} parent=11 // pred_check
          %p508 = pneg %p379
        $region70: #{tpu_custom_call.1} parent=11 // pred_check_branch
          %510 = sbr.rel (%p508) target = $region72
        $region71: #{tpu_custom_call.1} parent=11 // pred_region
          _
        $region72: #{tpu_custom_call.1} parent=11 // pred_fallthru
          _
        // Predicated region
        $region73: #{tpu_custom_call.1} parent=11 // pred_check
          %p511 = pneg %p400
        $region74: #{tpu_custom_call.1} parent=11 // pred_check_branch
          %513 = sbr.rel (%p511) target = $region76
        $region75: #{tpu_custom_call.1} parent=11 // pred_region
          _
        $region76: #{tpu_custom_call.1} parent=11 // pred_fallthru
          _
      $region12: #{tpu_custom_call.1} parent=5 // pred_fallthru
        _
      %p514 = scmp.lt.s32.totalorder %s26, 4
      // Predicated region
      $region77: #{tpu_custom_call.1} parent=5 // pred_check
        %p515 = pneg %p514
      $region78: #{tpu_custom_call.1} parent=5 // pred_check_branch
        %517 = sbr.rel (%p515) target = $region80
      $region79: #{tpu_custom_call.1} parent=5 // pred_region
        // Predicated region
        $region81: #{tpu_custom_call.1} parent=79 // pred_check
          %p518 = pneg %p58
        $region82: #{tpu_custom_call.1} parent=79 // pred_check_branch
          %520 = sbr.rel (%p518) target = $region84
        $region83: #{tpu_custom_call.1} parent=79 // pred_region
          %p521 = scmp.lt.s32.totalorder %s34, 1
          %s522 = scalar_select %p521, %s34, 1
          %s523 = smul.addr %s522, 8
          %s524 = scalar_lea.vmem %s0, %s523
        $region84: #{tpu_custom_call.1} parent=79 // pred_fallthru
          _
      $region80: #{tpu_custom_call.1} parent=5 // pred_fallthru
        _
      %p525 = scmp.le.s32.totalorder 1, %s26
      %p526 = scmp.lt.s32.totalorder %s26, 5
      %p527 = pnand %p525, %p526
      %p528 = pneg %p527
      // Predicated region
      $region85: #{tpu_custom_call.1} parent=5 // pred_check
        _
      $region86: #{tpu_custom_call.1} parent=5 // pred_check_branch
        %530 = sbr.rel (%p527) target = $region88
      $region87: #{tpu_custom_call.1} parent=5 // pred_region
        %s531 = ssub.s32 %s26, 1
        // Predicated region
        $region89: #{tpu_custom_call.1} parent=87 // pred_check
          %p532 = pneg %p127
        $region90: #{tpu_custom_call.1} parent=87 // pred_check_branch
          %534 = sbr.rel (%p532) target = $region92
        $region91: #{tpu_custom_call.1} parent=87 // pred_region
          %535 = dma.done [#allocation8], 1920
        $region92: #{tpu_custom_call.1} parent=87 // pred_fallthru
          _
        // Predicated region
        $region93: #{tpu_custom_call.1} parent=87 // pred_check
          %p536 = pneg %p169
        $region94: #{tpu_custom_call.1} parent=87 // pred_check_branch
          %538 = sbr.rel (%p536) target = $region96
        $region95: #{tpu_custom_call.1} parent=87 // pred_region
          %539 = dma.done [#allocation11], 10240
        $region96: #{tpu_custom_call.1} parent=87 // pred_fallthru
          _
        // Predicated region
        $region97: #{tpu_custom_call.1} parent=87 // pred_check
          %p540 = pneg %p253
        $region98: #{tpu_custom_call.1} parent=87 // pred_check_branch
          %542 = sbr.rel (%p540) target = $region100
        $region99: #{tpu_custom_call.1} parent=87 // pred_region
          %543 = dma.done [#allocation11], 4096
        $region100: #{tpu_custom_call.1} parent=87 // pred_fallthru
          _
        %p544 = scmp.lt.s32.totalorder %s36, 1
        %s545 = scalar_select %p544, %s36, 1
        %s546 = smul.addr %s545, 8
        %s547 = scalar_lea.vmem %s0, %s546
        %p548 = pneg %p64
        %p549 = pneg %p61
        %p550 = pneg %p85
        %p551 = pneg %p82
        %p552 = pneg %p106
        %p553 = pneg %p103
        %p554 = pneg %p127
        %p555 = pneg %p124
        %p556 = pneg %p148
        %p557 = pneg %p145
        %p558 = pneg %p169
        %p559 = pneg %p166
        %p560 = pneg %p190
        %p561 = pneg %p187
        %p562 = pneg %p211
        %p563 = pneg %p208
        %p564 = pneg %p232
        %p565 = pneg %p229
        %p566 = pneg %p253
        %p567 = pneg %p250
        %p568 = pneg %p274
        %p569 = pneg %p271
        %p570 = pneg %p295
        %p571 = pneg %p292
        %p572 = pneg %p316
        %p573 = pneg %p313
        %p574 = pneg %p337
        %p575 = pneg %p334
        %p576 = pneg %p358
        %p577 = pneg %p355
        %p578 = pneg %p379
        %p579 = pneg %p376
        %p580 = pneg %p400
        %p581 = pneg %p397
        %p582 = pneg %p421
        %p583 = pneg %p418
        %p584 = scmp.lt.s32.totalorder %s36, 1
        %s585 = scalar_select %p584, %s36, 1
        %s586 = smul.addr %s585, 8
        %s587 = scalar_lea.vmem %s0, %s586
        %v588 = vld [vmem:[%s587] sm:$0xff]
        %v589 = vld [vmem:[#allocation7] sm:$0xff]
        %v590 = vld [vmem:[#allocation7 + $0x8] sm:$0xff]
        %v591 = vld [vmem:[#allocation7 + $0x10] sm:$0xff]
        %v592 = vld [vmem:[#allocation7 + $0x18] sm:$0xff]
        %v593 = vld [vmem:[#allocation7 + $0x20] sm:$0xff]
        %v594 = vld [vmem:[#allocation7 + $0x28] sm:$0xff]
        %v595 = vld [vmem:[#allocation7 + $0x30] sm:$0xff]
        %v596 = vld [vmem:[#allocation7 + $0x38] sm:$0xff]
        %v597 = vld [vmem:[#allocation7 + $0x40] sm:$0xff]
        %v598 = vld [vmem:[#allocation7 + $0x48] sm:$0xff]
        %v599 = vld [vmem:[#allocation7 + $0x50] sm:$0xff]
        %v600 = vld [vmem:[#allocation7 + $0x58] sm:$0xff]
        %v601 = vld [vmem:[#allocation7 + $0x60] sm:$0xff]
        %v602 = vld [vmem:[#allocation7 + $0x68] sm:$0xff]
        %v603 = vld [vmem:[#allocation7 + $0x70] sm:$0xff]
        %v604 = vld [vmem:[%s4] sm:$0x7]
        %v606 = vlaneseq
        %v607 = vshrl.u32 %v606, 7
        %v608 = vsub.s32 0, %v607
        %v609 = vrot.slane %v604, %v608
        %v610 = vlaneseq
        %v611 = vshrl.u32 %v610, 7
        %v612 = vsub.s32 1, %v611
        %v613 = vrot.slane %v604, %v612
        %v614 = vlaneseq
        %v615 = vshrl.u32 %v614, 7
        %v616 = vsub.s32 2, %v615
        %v617 = vrot.slane %v604, %v616
        %vm621 = vcmask 326656
        %v623 = vsel %vm621, %v588, 0
        %625 = vmatprep.subr.mxu0 %v590
        %626 = vmatpush1.msra.mxu0 %v589
        %627 = vmatprep.subr.mxu0 %v593
        %628 = vmatpush1.msra.mxu0 %v592
        %629 = vmatprep.subr.mxu0 %v596
        %630 = vmatpush1.msra.mxu0 %v595
        %631 = vmatprep.subr.mxu0 %v599
        %632 = vmatpush1.msra.mxu0 %v598
        %633 = vmatprep.subr.mxu0 %v602
        %634 = vmatpush1.msra.mxu0 %v601
        %635 = vmatprep.subr.mxu0 0.0
        %636 = vmatpush1.msra.mxu0 0.0
        %637 = vmatprep.subr.mxu0 0.0
        %638 = vmatpush1.msra.mxu0 0.0
        %639 = vmatprep.subr.mxu0 0.0
        %640 = vmatpush1.msra.mxu0 0.0
        %641 = vmatprep.subr.mxu0 0.0
        %642 = vmatpush1.msra.mxu0 0.0
        %643 = vmatprep.subr.mxu0 0.0
        %644 = vmatpush1.msra.mxu0 0.0
        %645 = vmatprep.subr.mxu0 0.0
        %646 = vmatpush1.msra.mxu0 0.0
        %647 = vmatprep.subr.mxu0 0.0
        %648 = vmatpush1.msra.mxu0 0.0
        %649 = vmatprep.subr.mxu0 0.0
        %650 = vmatpush1.msra.mxu0 0.0
        %651 = vmatprep.subr.mxu0 0.0
        %652 = vmatpush1.msra.mxu0 0.0
        %653 = vmatprep.subr.mxu0 0.0
        %654 = vmatpush1.msra.mxu0 0.0
        %655 = vmatprep.subr.mxu0 0.0
        %656 = vmatpush1.msra.mxu0 0.0
        %657 = vmatprep.subr.mxu0 0.0
        %658 = vmatpush1.msra.mxu0 0.0
        %659 = vmatprep.subr.mxu0 0.0
        %660 = vmatpush1.msra.mxu0 0.0
        %661 = vmatprep.subr.mxu0 0.0
        %662 = vmatpush1.msra.mxu0 0.0
        %663 = vmatprep.subr.mxu0 0.0
        %664 = vmatpush1.msra.mxu0 0.0
        %665 = vmatprep.subr.mxu0 0.0
        %666 = vmatpush1.msra.mxu0 0.0
        %667 = vmatprep.subr.mxu0 0.0
        %668 = vmatpush1.msra.mxu0 0.0
        %669 = vmatprep.subr.mxu0 0.0
        %670 = vmatpush1.msra.mxu0 0.0
        %671 = vmatprep.subr.mxu0 0.0
        %672 = vmatpush1.msra.mxu0 0.0
        %673 = vmatprep.subr.mxu0 0.0
        %674 = vmatpush1.msra.mxu0 0.0
        %675 = vmatprep.subr.mxu0 0.0
        %676 = vmatpush1.msra.mxu0 0.0
        %677 = vmatprep.subr.mxu0 0.0
        %678 = vmatpush1.msra.mxu0 0.0
        %679 = vmatprep.subr.mxu0 0.0
        %680 = vmatpush1.msra.mxu0 0.0
        %681 = vmatprep.subr.mxu0 0.0
        %682 = vmatpush1.msra.mxu0 0.0
        %683 = vmatprep.subr.mxu0 0.0
        %684 = vmatpush1.msra.mxu0 0.0
        %685 = vmatprep.subr.mxu0 0.0
        %686 = vmatpush1.msra.mxu0 0.0
        %687 = vmatprep.subr.mxu0 0.0
        %688 = vmatpush1.msra.mxu0 0.0
        %689 = vmatprep.mubr.f32.mxu0 0.0
        %690 = vmatmul.mubr.f32.gmra.mrb[0].mxu0 %v623
        %v691 = vpop.f32.mrb[0].mxu0
        %v692 = vadd.f32 %v609, %v691
        %v693 = vpop.f32.mrb[0].mxu0
        %v694 = vadd.f32 %v613, %v693
        %695 = vdwg.mxu0
        %696 = vmatprep.subr.mxu0 0.0
        %697 = vmatpush1.msra.mxu0 %v591
        %698 = vmatprep.subr.mxu0 0.0
        %699 = vmatpush1.msra.mxu0 %v594
        %700 = vmatprep.subr.mxu0 0.0
        %701 = vmatpush1.msra.mxu0 %v597
        %702 = vmatprep.subr.mxu0 0.0
        %703 = vmatpush1.msra.mxu0 %v600
        %704 = vmatprep.subr.mxu0 0.0
        %705 = vmatpush1.msra.mxu0 %v603
        %706 = vmatprep.subr.mxu0 0.0
        %707 = vmatpush1.msra.mxu0 0.0
        %708 = vmatprep.subr.mxu0 0.0
        %709 = vmatpush1.msra.mxu0 0.0
        %710 = vmatprep.subr.mxu0 0.0
        %711 = vmatpush1.msra.mxu0 0.0
        %712 = vmatprep.subr.mxu0 0.0
        %713 = vmatpush1.msra.mxu0 0.0
        %714 = vmatprep.subr.mxu0 0.0
        %715 = vmatpush1.msra.mxu0 0.0
        %716 = vmatprep.subr.mxu0 0.0
        %717 = vmatpush1.msra.mxu0 0.0
        %718 = vmatprep.subr.mxu0 0.0
        %719 = vmatpush1.msra.mxu0 0.0
        %720 = vmatprep.subr.mxu0 0.0
        %721 = vmatpush1.msra.mxu0 0.0
        %722 = vmatprep.subr.mxu0 0.0
        %723 = vmatpush1.msra.mxu0 0.0
        %724 = vmatprep.subr.mxu0 0.0
        %725 = vmatpush1.msra.mxu0 0.0
        %726 = vmatprep.subr.mxu0 0.0
        %727 = vmatpush1.msra.mxu0 0.0
        %728 = vmatprep.subr.mxu0 0.0
        %729 = vmatpush1.msra.mxu0 0.0
        %730 = vmatprep.subr.mxu0 0.0
        %731 = vmatpush1.msra.mxu0 0.0
        %732 = vmatprep.subr.mxu0 0.0
        %733 = vmatpush1.msra.mxu0 0.0
        %734 = vmatprep.subr.mxu0 0.0
        %735 = vmatpush1.msra.mxu0 0.0
        %736 = vmatprep.subr.mxu0 0.0
        %737 = vmatpush1.msra.mxu0 0.0
        %738 = vmatprep.subr.mxu0 0.0
        %739 = vmatpush1.msra.mxu0 0.0
        %740 = vmatprep.subr.mxu0 0.0
        %741 = vmatpush1.msra.mxu0 0.0
        %742 = vmatprep.subr.mxu0 0.0
        %743 = vmatpush1.msra.mxu0 0.0
        %744 = vmatprep.subr.mxu0 0.0
        %745 = vmatpush1.msra.mxu0 0.0
        %746 = vmatprep.subr.mxu0 0.0
        %747 = vmatpush1.msra.mxu0 0.0
        %748 = vmatprep.subr.mxu0 0.0
        %749 = vmatpush1.msra.mxu0 0.0
        %750 = vmatprep.subr.mxu0 0.0
        %751 = vmatpush1.msra.mxu0 0.0
        %752 = vmatprep.subr.mxu0 0.0
        %753 = vmatpush1.msra.mxu0 0.0
        %754 = vmatprep.subr.mxu0 0.0
        %755 = vmatpush1.msra.mxu0 0.0
        %756 = vmatprep.subr.mxu0 0.0
        %757 = vmatpush1.msra.mxu0 0.0
        %758 = vmatprep.subr.mxu0 0.0
        %759 = vmatpush1.msra.mxu0 0.0
        %760 = vmatprep.mubr.f32.mxu0 0.0
        %761 = vmatmul.mubr.f32.gmra.mrb[0].mxu0 %v623
        %v762 = vpop.f32.mrb[0].mxu0
        %v763 = vadd.f32 %v617, %v762
        %v764 = vpop.f32.mrb[0].mxu0
        %765 = vdwg.mxu0
        %v766 = vmax.f32 %v692, 0.0
        %v767 = vmax.f32 %v694, 0.0
        %v768 = vmax.f32 %v763, 0.0
        %v769 = vld [vmem:[#allocation10] sm:$0xff]
        %v770 = vld [vmem:[#allocation10 + $0x8] sm:$0xff]
        %v771 = vld [vmem:[#allocation10 + $0x10] sm:$0xff]
        %v772 = vld [vmem:[#allocation10 + $0x18] sm:$0xff]
        %v773 = vld [vmem:[#allocation10 + $0x20] sm:$0xff]
        %v774 = vld [vmem:[#allocation10 + $0x28] sm:$0xff]
        %v775 = vld [vmem:[#allocation10 + $0x30] sm:$0xff]
        %v776 = vld [vmem:[#allocation10 + $0x38] sm:$0xff]
        %v777 = vld [vmem:[#allocation10 + $0x40] sm:$0xff]
        %v778 = vld [vmem:[#allocation10 + $0x48] sm:$0xff]
        %v779 = vld [vmem:[#allocation10 + $0x50] sm:$0xff]
        %v780 = vld [vmem:[#allocation10 + $0x58] sm:$0xff]
        %v781 = vld [vmem:[#allocation10 + $0x60] sm:$0xff]
        %v782 = vld [vmem:[#allocation10 + $0x68] sm:$0xff]
        %v783 = vld [vmem:[#allocation10 + $0x70] sm:$0xff]
        %v784 = vld [vmem:[#allocation10 + $0x78] sm:$0xff]
        %v785 = vld [vmem:[#allocation10 + $0x80] sm:$0xff]
        %v786 = vld [vmem:[#allocation10 + $0x88] sm:$0xff]
        %v787 = vld [vmem:[#allocation10 + $0x90] sm:$0xff]
        %v788 = vld [vmem:[#allocation10 + $0x98] sm:$0xff]
        %v789 = vld [vmem:[#allocation10 + $0xa0] sm:$0xff]
        %v790 = vld [vmem:[#allocation10 + $0xa8] sm:$0xff]
        %v791 = vld [vmem:[#allocation10 + $0xb0] sm:$0xff]
        %v792 = vld [vmem:[#allocation10 + $0xb8] sm:$0xff]
        %v793 = vld [vmem:[#allocation10 + $0xc0] sm:$0xff]
        %v794 = vld [vmem:[#allocation10 + $0xc8] sm:$0xff]
        %v795 = vld [vmem:[#allocation10 + $0xd0] sm:$0xff]
        %v796 = vld [vmem:[#allocation10 + $0xd8] sm:$0xff]
        %v797 = vld [vmem:[#allocation10 + $0xe0] sm:$0xff]
        %v798 = vld [vmem:[#allocation10 + $0xe8] sm:$0xff]
        %v799 = vld [vmem:[#allocation10 + $0xf0] sm:$0xff]
        %v800 = vld [vmem:[#allocation10 + $0xf8] sm:$0xff]
        %v801 = vld [vmem:[#allocation10 + $0x100] sm:$0xff]
        %v802 = vld [vmem:[#allocation10 + $0x108] sm:$0xff]
        %v803 = vld [vmem:[#allocation10 + $0x110] sm:$0xff]
        %v804 = vld [vmem:[#allocation10 + $0x118] sm:$0xff]
        %v805 = vld [vmem:[#allocation10 + $0x120] sm:$0xff]
        %v806 = vld [vmem:[#allocation10 + $0x128] sm:$0xff]
        %v807 = vld [vmem:[#allocation10 + $0x130] sm:$0xff]
        %v808 = vld [vmem:[#allocation10 + $0x138] sm:$0xff]
        %v809 = vld [vmem:[#allocation10 + $0x140] sm:$0xff]
        %v810 = vld [vmem:[#allocation10 + $0x148] sm:$0xff]
        %v811 = vld [vmem:[#allocation10 + $0x150] sm:$0xff]
        %v812 = vld [vmem:[#allocation10 + $0x158] sm:$0xff]
        %v813 = vld [vmem:[#allocation10 + $0x160] sm:$0xff]
        %v814 = vld [vmem:[#allocation10 + $0x168] sm:$0xff]
        %v815 = vld [vmem:[#allocation10 + $0x170] sm:$0xff]
        %v816 = vld [vmem:[#allocation10 + $0x178] sm:$0xff]
        %v817 = vld [vmem:[#allocation10 + $0x180] sm:$0xff]
        %v818 = vld [vmem:[#allocation10 + $0x188] sm:$0xff]
        %v819 = vld [vmem:[#allocation10 + $0x190] sm:$0xff]
        %v820 = vld [vmem:[#allocation10 + $0x198] sm:$0xff]
        %v821 = vld [vmem:[#allocation10 + $0x1a0] sm:$0xff]
        %v822 = vld [vmem:[#allocation10 + $0x1a8] sm:$0xff]
        %v823 = vld [vmem:[#allocation10 + $0x1b0] sm:$0xff]
        %v824 = vld [vmem:[#allocation10 + $0x1b8] sm:$0xff]
        %v825 = vld [vmem:[#allocation10 + $0x1c0] sm:$0xff]
        %v826 = vld [vmem:[#allocation10 + $0x1c8] sm:$0xff]
        %v827 = vld [vmem:[#allocation10 + $0x1d0] sm:$0xff]
        %v828 = vld [vmem:[#allocation10 + $0x1d8] sm:$0xff]
        %v829 = vld [vmem:[#allocation10 + $0x1e0] sm:$0xff]
        %v830 = vld [vmem:[#allocation10 + $0x1e8] sm:$0xff]
        %v831 = vld [vmem:[#allocation10 + $0x1f0] sm:$0xff]
        %v832 = vld [vmem:[#allocation10 + $0x1f8] sm:$0xff]
        %v833 = vld [vmem:[#allocation10 + $0x200] sm:$0xff]
        %v834 = vld [vmem:[#allocation10 + $0x208] sm:$0xff]
        %v835 = vld [vmem:[#allocation10 + $0x210] sm:$0xff]
        %v836 = vld [vmem:[#allocation10 + $0x218] sm:$0xff]
        %v837 = vld [vmem:[#allocation10 + $0x220] sm:$0xff]
        %v838 = vld [vmem:[#allocation10 + $0x228] sm:$0xff]
        %v839 = vld [vmem:[#allocation10 + $0x230] sm:$0xff]
        %v840 = vld [vmem:[#allocation10 + $0x238] sm:$0xff]
        %v841 = vld [vmem:[#allocation10 + $0x240] sm:$0xff]
        %v842 = vld [vmem:[#allocation10 + $0x248] sm:$0xff]
        %v843 = vld [vmem:[#allocation10 + $0x250] sm:$0xff]
        %v844 = vld [vmem:[#allocation10 + $0x258] sm:$0xff]
        %v845 = vld [vmem:[#allocation10 + $0x260] sm:$0xff]
        %v846 = vld [vmem:[#allocation10 + $0x268] sm:$0xff]
        %v847 = vld [vmem:[#allocation10 + $0x270] sm:$0xff]
        %v848 = vld [vmem:[#allocation10 + $0x278] sm:$0xff]
        %v849 = vld [vmem:[%s6] sm:$0x3]
        %v851 = vlaneseq
        %v852 = vshrl.u32 %v851, 7
        %v853 = vsub.s32 0, %v852
        %v854 = vrot.slane %v849, %v853
        %v855 = vlaneseq
        %v856 = vshrl.u32 %v855, 7
        %v857 = vsub.s32 1, %v856
        %v858 = vrot.slane %v849, %v857
        %vm861 = vcmask 523264
        %v863 = vsel %vm861, %v768, 0
        %865 = vmatprep.subr.mxu0 %v770
        %866 = vmatpush1.msra.mxu0 %v769
        %867 = vmatprep.subr.mxu0 %v772
        %868 = vmatpush1.msra.mxu0 %v771
        %869 = vmatprep.subr.mxu0 %v774
        %870 = vmatpush1.msra.mxu0 %v773
        %871 = vmatprep.subr.mxu0 %v776
        %872 = vmatpush1.msra.mxu0 %v775
        %873 = vmatprep.subr.mxu0 %v778
        %874 = vmatpush1.msra.mxu0 %v777
        %875 = vmatprep.subr.mxu0 %v780
        %876 = vmatpush1.msra.mxu0 %v779
        %877 = vmatprep.subr.mxu0 %v782
        %878 = vmatpush1.msra.mxu0 %v781
        %879 = vmatprep.subr.mxu0 %v784
        %880 = vmatpush1.msra.mxu0 %v783
        %881 = vmatprep.subr.mxu0 %v786
        %882 = vmatpush1.msra.mxu0 %v785
        %883 = vmatprep.subr.mxu0 %v788
        %884 = vmatpush1.msra.mxu0 %v787
        %885 = vmatprep.subr.mxu0 %v790
        %886 = vmatpush1.msra.mxu0 %v789
        %887 = vmatprep.subr.mxu0 %v792
        %888 = vmatpush1.msra.mxu0 %v791
        %889 = vmatprep.subr.mxu0 %v794
        %890 = vmatpush1.msra.mxu0 %v793
        %891 = vmatprep.subr.mxu0 %v796
        %892 = vmatpush1.msra.mxu0 %v795
        %893 = vmatprep.subr.mxu0 %v798
        %894 = vmatpush1.msra.mxu0 %v797
        %895 = vmatprep.subr.mxu0 %v800
        %896 = vmatpush1.msra.mxu0 %v799
        %897 = vmatprep.subr.mxu0 %v802
        %898 = vmatpush1.msra.mxu0 %v801
        %899 = vmatprep.subr.mxu0 %v804
        %900 = vmatpush1.msra.mxu0 %v803
        %901 = vmatprep.subr.mxu0 %v806
        %902 = vmatpush1.msra.mxu0 %v805
        %903 = vmatprep.subr.mxu0 %v808
        %904 = vmatpush1.msra.mxu0 %v807
        %905 = vmatprep.subr.mxu0 %v810
        %906 = vmatpush1.msra.mxu0 %v809
        %907 = vmatprep.subr.mxu0 %v812
        %908 = vmatpush1.msra.mxu0 %v811
        %909 = vmatprep.subr.mxu0 %v814
        %910 = vmatpush1.msra.mxu0 %v813
        %911 = vmatprep.subr.mxu0 %v816
        %912 = vmatpush1.msra.mxu0 %v815
        %913 = vmatprep.subr.mxu0 %v818
        %914 = vmatpush1.msra.mxu0 %v817
        %915 = vmatprep.subr.mxu0 %v820
        %916 = vmatpush1.msra.mxu0 %v819
        %917 = vmatprep.subr.mxu0 %v822
        %918 = vmatpush1.msra.mxu0 %v821
        %919 = vmatprep.subr.mxu0 %v824
        %920 = vmatpush1.msra.mxu0 %v823
        %921 = vmatprep.subr.mxu0 %v826
        %922 = vmatpush1.msra.mxu0 %v825
        %923 = vmatprep.subr.mxu0 %v828
        %924 = vmatpush1.msra.mxu0 %v827
        %925 = vmatprep.subr.mxu0 %v830
        %926 = vmatpush1.msra.mxu0 %v829
        %927 = vmatprep.subr.mxu0 %v832
        %928 = vmatpush1.msra.mxu0 %v831
        %929 = vmatprep.mubr.f32.mxu0 %v767
        %930 = vmatmul.mubr.f32.gmra.mrb[0].mxu0 %v766
        %v931 = vpop.f32.mrb[0].mxu0
        %v932 = vadd.f32 %v854, %v931
        %v933 = vpop.f32.mrb[0].mxu0
        %v934 = vadd.f32 %v858, %v933
        %935 = vdwg.mxu0
        %936 = vmatprep.subr.mxu0 %v834
        %937 = vmatpush1.msra.mxu0 %v833
        %938 = vmatprep.subr.mxu0 %v836
        %939 = vmatpush1.msra.mxu0 %v835
        %940 = vmatprep.subr.mxu0 %v838
        %941 = vmatpush1.msra.mxu0 %v837
        %942 = vmatprep.subr.mxu0 %v840
        %943 = vmatpush1.msra.mxu0 %v839
        %944 = vmatprep.subr.mxu0 %v842
        %945 = vmatpush1.msra.mxu0 %v841
        %946 = vmatprep.subr.mxu0 %v844
        %947 = vmatpush1.msra.mxu0 %v843
        %948 = vmatprep.subr.mxu0 %v846
        %949 = vmatpush1.msra.mxu0 %v845
        %950 = vmatprep.subr.mxu0 %v848
        %951 = vmatpush1.msra.mxu0 %v847
        %952 = vmatprep.subr.mxu0 0.0
        %953 = vmatpush1.msra.mxu0 0.0
        %954 = vmatprep.subr.mxu0 0.0
        %955 = vmatpush1.msra.mxu0 0.0
        %956 = vmatprep.subr.mxu0 0.0
        %957 = vmatpush1.msra.mxu0 0.0
        %958 = vmatprep.subr.mxu0 0.0
        %959 = vmatpush1.msra.mxu0 0.0
        %960 = vmatprep.subr.mxu0 0.0
        %961 = vmatpush1.msra.mxu0 0.0
        %962 = vmatprep.subr.mxu0 0.0
        %963 = vmatpush1.msra.mxu0 0.0
        %964 = vmatprep.subr.mxu0 0.0
        %965 = vmatpush1.msra.mxu0 0.0
        %966 = vmatprep.subr.mxu0 0.0
        %967 = vmatpush1.msra.mxu0 0.0
        %968 = vmatprep.subr.mxu0 0.0
        %969 = vmatpush1.msra.mxu0 0.0
        %970 = vmatprep.subr.mxu0 0.0
        %971 = vmatpush1.msra.mxu0 0.0
        %972 = vmatprep.subr.mxu0 0.0
        %973 = vmatpush1.msra.mxu0 0.0
        %974 = vmatprep.subr.mxu0 0.0
        %975 = vmatpush1.msra.mxu0 0.0
        %976 = vmatprep.subr.mxu0 0.0
        %977 = vmatpush1.msra.mxu0 0.0
        %978 = vmatprep.subr.mxu0 0.0
        %979 = vmatpush1.msra.mxu0 0.0
        %980 = vmatprep.subr.mxu0 0.0
        %981 = vmatpush1.msra.mxu0 0.0
        %982 = vmatprep.subr.mxu0 0.0
        %983 = vmatpush1.msra.mxu0 0.0
        %984 = vmatprep.subr.mxu0 0.0
        %985 = vmatpush1.msra.mxu0 0.0
        %986 = vmatprep.subr.mxu0 0.0
        %987 = vmatpush1.msra.mxu0 0.0
        %988 = vmatprep.subr.mxu0 0.0
        %989 = vmatpush1.msra.mxu0 0.0
        %990 = vmatprep.subr.mxu0 0.0
        %991 = vmatpush1.msra.mxu0 0.0
        %992 = vmatprep.subr.mxu0 0.0
        %993 = vmatpush1.msra.mxu0 0.0
        %994 = vmatprep.subr.mxu0 0.0
        %995 = vmatpush1.msra.mxu0 0.0
        %996 = vmatprep.subr.mxu0 0.0
        %997 = vmatpush1.msra.mxu0 0.0
        %998 = vmatprep.subr.mxu0 0.0
        %999 = vmatpush1.msra.mxu0 0.0
        %1000 = vmatprep.mubr.f32.mxu0 0.0
        %1001 = vmatmul.mubr.f32.gmra.mrb[0].mxu0 %v863
        %v1002 = vpop.f32.mrb[0].mxu0
        %v1003 = vadd.f32 %v932, %v1002
        %v1004 = vpop.f32.mrb[0].mxu0
        %v1005 = vadd.f32 %v934, %v1004
        %1006 = vdwg.mxu0
        %p1007 = scmp.eq.s32.totalorder %s35, 0
        // Predicated region
        $region101: #{tpu_custom_call.1} parent=87 // pred_check
          %p1008 = pneg %p1007
        $region102: #{tpu_custom_call.1} parent=87 // pred_check_branch
          %1010 = sbr.rel (%p1008) target = $region104
        $region103: #{tpu_custom_call.1} parent=87 // pred_region
          %p1011 = scmp.eq.s32.totalorder %s36, 0
          // Predicated region
          $region105: #{tpu_custom_call.1} parent=103 // pred_check
            %p1012 = pneg %p1011
          $region106: #{tpu_custom_call.1} parent=103 // pred_check_branch
            %1014 = sbr.rel (%p1012) target = $region108
          $region107: #{tpu_custom_call.1} parent=103 // pred_region
            %v1015 = vlaneseq
            %vm1016 = vcmp.ge.s32.totalorder %v1015, 0
            %vm1017 = vcmp.lt.s32.totalorder %v1015, 256
            %vm1018 = vmand %vm1016, %vm1017
            %1019 = vst.msk [vmem:[#allocation2] sm:$0x3] %vm1018, 0.0
            %1020 = vst.msk [vmem:[#allocation3] sm:$0x3] %vm1018, 0.0
          $region108: #{tpu_custom_call.1} parent=103 // pred_fallthru
            _
          %p1021 = scmp.lt.s32.totalorder %s36, 1
          // Predicated region
          $region109: #{tpu_custom_call.1} parent=103 // pred_check
            %p1022 = pneg %p1021
          $region110: #{tpu_custom_call.1} parent=103 // pred_check_branch
            %1024 = sbr.rel (%p1022) target = $region112
          $region111: #{tpu_custom_call.1} parent=103 // pred_region
            %v1025 = vld [vmem:[#allocation2] sm:$0x3]
            %v1026 = vrot.slane %v1003, 4
            %v1027 = vadd.f32 %v1003, %v1026
            %v1028 = vrot.slane %v1027, 2
            %v1029 = vadd.f32 %v1027, %v1028
            %v1030 = vrot.slane %v1029, 1
            %v1031 = vadd.f32 %v1029, %v1030
            %v1032 = vrot.slane %v1005, 4
            %v1033 = vadd.f32 %v1005, %v1032
            %v1034 = vrot.slane %v1033, 2
            %v1035 = vadd.f32 %v1033, %v1034
            %v1036 = vrot.slane %v1035, 1
            %v1037 = vadd.f32 %v1035, %v1036
            %v1040 = vcombine.low %v1031, %v1037
            %v1042 = vunpack.c.l.s4 1966171168
            %v1043 = vunpack.c.0.s8 %v1042
            %v1044 = vlaneseq
            %v1045 = vshrl.u32 %v1044, 7
            %v1046 = vsub.s32 %v1043, %v1045
            %v1047 = vrot.slane %v1040, %v1046
            %v1049 = vunpack.c.l.s4 1966171168
            %v1050 = vunpack.c.0.s8 %v1049
            %v1051 = vlaneseq
            %v1052 = vshrl.u32 %v1051, 7
            %v1053 = vsub.s32 %v1050, %v1052
            %v1054 = vrot.slane %v1047, %v1053
            %v1056 = vadd.f32 %v1025, %v1054
            %v1057 = vlaneseq
            %vm1058 = vcmp.ge.s32.totalorder %v1057, 0
            %vm1059 = vcmp.lt.s32.totalorder %v1057, 256
            %vm1060 = vmand %vm1058, %vm1059
            %1061 = vst.msk [vmem:[#allocation2] sm:$0x3] %vm1060, %v1056
            %v1062 = vld [vmem:[#allocation3] sm:$0x3]
            %v1063 = vmul.f32 %v1003, %v1003
            %v1064 = vmul.f32 %v1005, %v1005
            %v1065 = vrot.slane %v1063, 4
            %v1066 = vadd.f32 %v1063, %v1065
            %v1067 = vrot.slane %v1066, 2
            %v1068 = vadd.f32 %v1066, %v1067
            %v1069 = vrot.slane %v1068, 1
            %v1070 = vadd.f32 %v1068, %v1069
            %v1071 = vrot.slane %v1064, 4
            %v1072 = vadd.f32 %v1064, %v1071
            %v1073 = vrot.slane %v1072, 2
            %v1074 = vadd.f32 %v1072, %v1073
            %v1075 = vrot.slane %v1074, 1
            %v1076 = vadd.f32 %v1074, %v1075
            %v1079 = vcombine.low %v1070, %v1076
            %v1081 = vunpack.c.l.s4 1966171168
            %v1082 = vunpack.c.0.s8 %v1081
            %v1083 = vlaneseq
            %v1084 = vshrl.u32 %v1083, 7
            %v1085 = vsub.s32 %v1082, %v1084
            %v1086 = vrot.slane %v1079, %v1085
            %v1088 = vunpack.c.l.s4 1966171168
            %v1089 = vunpack.c.0.s8 %v1088
            %v1090 = vlaneseq
            %v1091 = vshrl.u32 %v1090, 7
            %v1092 = vsub.s32 %v1089, %v1091
            %v1093 = vrot.slane %v1086, %v1092
            %v1095 = vadd.f32 %v1062, %v1093
            %1096 = vst.msk [vmem:[#allocation3] sm:$0x3] %vm1060, %v1095
          $region112: #{tpu_custom_call.1} parent=103 // pred_fallthru
            _
          %p1097 = scmp.eq.s32.totalorder %s36, 1
          // Predicated region
          $region113: #{tpu_custom_call.1} parent=103 // pred_check
            %p1098 = pneg %p1097
          $region114: #{tpu_custom_call.1} parent=103 // pred_check_branch
            %1100 = sbr.rel (%p1098) target = $region116
          $region115: #{tpu_custom_call.1} parent=103 // pred_region
            %s1101 = smul.u32 %s36, 8
            %v1102 = vlaneseq
            %v1103 = vshrl.u32 %v1102, 7
            %v1104 = vstv %s1101
            %v1105 = vadd.s32 %v1104, %v1103
            %vm1106 = vcmp.lt.s32.totalorder %v1105, 12
            %v1107 = vsel %vm1106, 1, 0
            %vm1108 = vcmp.eq.s32.totalorder %v1107, 1
            %v1109 = vsel %vm1108, %v1003, 0.0
            %v1110 = vsel %vm1108, %v1005, 0.0
            %v1111 = vld [vmem:[#allocation2] sm:$0x3]
            %v1112 = vrot.slane %v1109, 4
            %v1113 = vadd.f32 %v1109, %v1112
            %v1114 = vrot.slane %v1113, 2
            %v1115 = vadd.f32 %v1113, %v1114
            %v1116 = vrot.slane %v1115, 1
            %v1117 = vadd.f32 %v1115, %v1116
            %v1118 = vrot.slane %v1110, 4
            %v1119 = vadd.f32 %v1110, %v1118
            %v1120 = vrot.slane %v1119, 2
            %v1121 = vadd.f32 %v1119, %v1120
            %v1122 = vrot.slane %v1121, 1
            %v1123 = vadd.f32 %v1121, %v1122
            %v1126 = vcombine.low %v1117, %v1123
            %v1128 = vunpack.c.l.s4 1966171168
            %v1129 = vunpack.c.0.s8 %v1128
            %v1130 = vlaneseq
            %v1131 = vshrl.u32 %v1130, 7
            %v1132 = vsub.s32 %v1129, %v1131
            %v1133 = vrot.slane %v1126, %v1132
            %v1135 = vunpack.c.l.s4 1966171168
            %v1136 = vunpack.c.0.s8 %v1135
            %v1137 = vlaneseq
            %v1138 = vshrl.u32 %v1137, 7
            %v1139 = vsub.s32 %v1136, %v1138
            %v1140 = vrot.slane %v1133, %v1139
            %v1142 = vadd.f32 %v1111, %v1140
            %v1143 = vlaneseq
            %vm1144 = vcmp.ge.s32.totalorder %v1143, 0
            %vm1145 = vcmp.lt.s32.totalorder %v1143, 256
            %vm1146 = vmand %vm1144, %vm1145
            %1147 = vst.msk [vmem:[#allocation2] sm:$0x3] %vm1146, %v1142
            %v1148 = vld [vmem:[#allocation3] sm:$0x3]
            %v1149 = vmul.f32 %v1109, %v1109
            %v1150 = vmul.f32 %v1110, %v1110
            %v1151 = vrot.slane %v1149, 4
            %v1152 = vadd.f32 %v1149, %v1151
            %v1153 = vrot.slane %v1152, 2
            %v1154 = vadd.f32 %v1152, %v1153
            %v1155 = vrot.slane %v1154, 1
            %v1156 = vadd.f32 %v1154, %v1155
            %v1157 = vrot.slane %v1150, 4
            %v1158 = vadd.f32 %v1150, %v1157
            %v1159 = vrot.slane %v1158, 2
            %v1160 = vadd.f32 %v1158, %v1159
            %v1161 = vrot.slane %v1160, 1
            %v1162 = vadd.f32 %v1160, %v1161
            %v1165 = vcombine.low %v1156, %v1162
            %v1167 = vunpack.c.l.s4 1966171168
            %v1168 = vunpack.c.0.s8 %v1167
            %v1169 = vlaneseq
            %v1170 = vshrl.u32 %v1169, 7
            %v1171 = vsub.s32 %v1168, %v1170
            %v1172 = vrot.slane %v1165, %v1171
            %v1174 = vunpack.c.l.s4 1966171168
            %v1175 = vunpack.c.0.s8 %v1174
            %v1176 = vlaneseq
            %v1177 = vshrl.u32 %v1176, 7
            %v1178 = vsub.s32 %v1175, %v1177
            %v1179 = vrot.slane %v1172, %v1178
            %v1181 = vadd.f32 %v1148, %v1179
            %1182 = vst.msk [vmem:[#allocation3] sm:$0x3] %vm1146, %v1181
          $region116: #{tpu_custom_call.1} parent=103 // pred_fallthru
            _
        $region104: #{tpu_custom_call.1} parent=87 // pred_fallthru
          _
        %p1183 = scmp.eq.s32.totalorder %s35, 1
        // Predicated region
        $region117: #{tpu_custom_call.1} parent=87 // pred_check
          %p1184 = pneg %p1183
        $region118: #{tpu_custom_call.1} parent=87 // pred_check_branch
          %1186 = sbr.rel (%p1184) target = $region120
        $region119: #{tpu_custom_call.1} parent=87 // pred_region
          %p1187 = scmp.eq.s32.totalorder %s36, 0
          // Predicated region
          $region121: #{tpu_custom_call.1} parent=119 // pred_check
            %p1188 = pneg %p1187
          $region122: #{tpu_custom_call.1} parent=119 // pred_check_branch
            %1190 = sbr.rel (%p1188) target = $region124
          $region123: #{tpu_custom_call.1} parent=119 // pred_region
            %v1191 = vld [vmem:[#allocation2] sm:$0x3]
            %v1192 = vmul.f32 %v1191, 0.083333336
            %v1193 = vld [vmem:[#allocation3] sm:$0x3]
            %v1194 = vmul.f32 %v1193, 0.083333336
            %v1195 = vmul.f32 %v1192, %v1192
            %v1196 = vsub.f32 %v1194, %v1195
            %v1197 = vmax.f32 %v1196, 0.0
            %v1198 = vld [vmem:[%s7] sm:$0x3]
            %v1199 = vadd.f32 %v1197, 1e-05
            %v1200 = vrsqrt.pop %v1199
            %v1201 = vmul.f32 %v1198, %v1200
            %v1202 = vlaneseq
            %vm1203 = vcmp.ge.s32.totalorder %v1202, 0
            %vm1204 = vcmp.lt.s32.totalorder %v1202, 256
            %vm1205 = vmand %vm1203, %vm1204
            %1206 = vst.msk [vmem:[#allocation4] sm:$0x3] %vm1205, %v1201
            %v1207 = vld [vmem:[%s8] sm:$0x3]
            %v1208 = vmul.f32 %v1192, %v1201
            %v1209 = vsub.f32 %v1207, %v1208
            %1210 = vst.msk [vmem:[#allocation5] sm:$0x3] %vm1205, %v1209
            %1211 = vst [vmem:[#allocation6] sm:$0xff] 0.0
            %1212 = vst [vmem:[#allocation6 + $0x8] sm:$0xff] 0.0
          $region124: #{tpu_custom_call.1} parent=119 // pred_fallthru
            _
          %v1213 = vld [vmem:[#allocation4] sm:$0x3]
          %v1215 = vlaneseq
          %v1216 = vshrl.u32 %v1215, 7
          %v1217 = vsub.s32 0, %v1216
          %v1218 = vrot.slane %v1213, %v1217
          %v1219 = vlaneseq
          %v1220 = vshrl.u32 %v1219, 7
          %v1221 = vsub.s32 1, %v1220
          %v1222 = vrot.slane %v1213, %v1221
          %v1225 = vmul.f32 %v1003, %v1218
          %v1226 = vmul.f32 %v1005, %v1222
          %v1227 = vld [vmem:[#allocation5] sm:$0x3]
          %v1229 = vlaneseq
          %v1230 = vshrl.u32 %v1229, 7
          %v1231 = vsub.s32 0, %v1230
          %v1232 = vrot.slane %v1227, %v1231
          %v1233 = vlaneseq
          %v1234 = vshrl.u32 %v1233, 7
          %v1235 = vsub.s32 1, %v1234
          %v1236 = vrot.slane %v1227, %v1235
          %v1239 = vadd.f32 %v1225, %v1232
          %v1240 = vadd.f32 %v1226, %v1236
          %v1241 = vmax.f32 %v1239, 0.0
          %v1242 = vmax.f32 %v1240, 0.0
          %v1243 = vld [vmem:[%s1] sm:$0xff]
          %v1244 = vld [vmem:[%s2] sm:$0xff]
          %p1245 = scmp.lt.s32.totalorder %s36, 1
          // Predicated region
          $region125: #{tpu_custom_call.1} parent=119 // pred_check
            %p1246 = pneg %p1245
          $region126: #{tpu_custom_call.1} parent=119 // pred_check_branch
            %1248 = sbr.rel (%p1246) target = $region128
          $region127: #{tpu_custom_call.1} parent=119 // pred_region
            %s1249 = smul.u32 %s36, 8
            %v1250 = vlaneseq
            %v1251 = vand.u32 %v1250, 127
            %v1252 = vstv %s1249
            %v1253 = vadd.s32 %v1252, %v1251
            %1254 = vset.pattern.permute.xlu0 0
            %1255 = vperm.xlu0 %1254, %v1243
            %v1256 = vpop.permute.xlu0 %1255
            %vm1257 = vcmp.ge.s32.totalorder %v1253, %v1256
            %v1258 = vadd.s32 %v1243, %v1244
            %1259 = vset.pattern.permute.xlu0 0
            %1260 = vperm.xlu0 %1259, %v1258
            %v1261 = vpop.permute.xlu0 %1260
            %vm1262 = vcmp.lt.s32.totalorder %v1253, %v1261
            %vm1263 = vmand %vm1257, %vm1262
            %v1264 = vsel %vm1263, 1, 0
            %v1265 = vcvt.s32.f32 %v1264
            %v1266 = vld [vmem:[#allocation6] sm:$0xff]
            %v1267 = vld [vmem:[#allocation6 + $0x8] sm:$0xff]
            %vm1268 = vcmask 64512
            %v1270 = vsel %vm1268, %v1265, 0
            %1272 = vmatprep.subr.mxu0 %v1242
            %1273 = vmatpush1.msra.mxu0 %v1241
            %1274 = vmatprep.subr.mxu0 0.0
            %1275 = vmatpush1.msra.mxu0 0.0
            %1276 = vmatprep.subr.mxu0 0.0
            %1277 = vmatpush1.msra.mxu0 0.0
            %1278 = vmatprep.subr.mxu0 0.0
            %1279 = vmatpush1.msra.mxu0 0.0
            %1280 = vmatprep.subr.mxu0 0.0
            %1281 = vmatpush1.msra.mxu0 0.0
            %1282 = vmatprep.subr.mxu0 0.0
            %1283 = vmatpush1.msra.mxu0 0.0
            %1284 = vmatprep.subr.mxu0 0.0
            %1285 = vmatpush1.msra.mxu0 0.0
            %1286 = vmatprep.subr.mxu0 0.0
            %1287 = vmatpush1.msra.mxu0 0.0
            %1288 = vmatprep.subr.mxu0 0.0
            %1289 = vmatpush1.msra.mxu0 0.0
            %1290 = vmatprep.subr.mxu0 0.0
            %1291 = vmatpush1.msra.mxu0 0.0
            %1292 = vmatprep.subr.mxu0 0.0
            %1293 = vmatpush1.msra.mxu0 0.0
            %1294 = vmatprep.subr.mxu0 0.0
            %1295 = vmatpush1.msra.mxu0 0.0
            %1296 = vmatprep.subr.mxu0 0.0
            %1297 = vmatpush1.msra.mxu0 0.0
            %1298 = vmatprep.subr.mxu0 0.0
            %1299 = vmatpush1.msra.mxu0 0.0
            %1300 = vmatprep.subr.mxu0 0.0
            %1301 = vmatpush1.msra.mxu0 0.0
            %1302 = vmatprep.subr.mxu0 0.0
            %1303 = vmatpush1.msra.mxu0 0.0
            %1304 = vmatprep.subr.mxu0 0.0
            %1305 = vmatpush1.msra.mxu0 0.0
            %1306 = vmatprep.subr.mxu0 0.0
            %1307 = vmatpush1.msra.mxu0 0.0
            %1308 = vmatprep.subr.mxu0 0.0
            %1309 = vmatpush1.msra.mxu0 0.0
            %1310 = vmatprep.subr.mxu0 0.0
            %1311 = vmatpush1.msra.mxu0 0.0
            %1312 = vmatprep.subr.mxu0 0.0
            %1313 = vmatpush1.msra.mxu0 0.0
            %1314 = vmatprep.subr.mxu0 0.0
            %1315 = vmatpush1.msra.mxu0 0.0
            %1316 = vmatprep.subr.mxu0 0.0
            %1317 = vmatpush1.msra.mxu0 0.0
            %1318 = vmatprep.subr.mxu0 0.0
            %1319 = vmatpush1.msra.mxu0 0.0
            %1320 = vmatprep.subr.mxu0 0.0
            %1321 = vmatpush1.msra.mxu0 0.0
            %1322 = vmatprep.subr.mxu0 0.0
            %1323 = vmatpush1.msra.mxu0 0.0
            %1324 = vmatprep.subr.mxu0 0.0
            %1325 = vmatpush1.msra.mxu0 0.0
            %1326 = vmatprep.subr.mxu0 0.0
            %1327 = vmatpush1.msra.mxu0 0.0
            %1328 = vmatprep.subr.mxu0 0.0
            %1329 = vmatpush1.msra.mxu0 0.0
            %1330 = vmatprep.subr.mxu0 0.0
            %1331 = vmatpush1.msra.mxu0 0.0
            %1332 = vmatprep.subr.mxu0 0.0
            %1333 = vmatpush1.msra.mxu0 0.0
            %1334 = vmatprep.subr.mxu0 0.0
            %1335 = vmatpush1.msra.mxu0 0.0
            %1336 = vmatprep.mubr.f32.mxu0 0.0
            %1337 = vmatmul.mubr.f32.gmra.mrb[0].mxu0 %v1270
            %v1338 = vpop.f32.mrb[0].mxu0
            %v1339 = vadd.f32 0.0, %v1338
            %v1340 = vpop.f32.mrb[0].mxu0
            %v1341 = vadd.f32 0.0, %v1340
            %1342 = vdwg.mxu0
            %v1343 = vadd.f32 %v1266, %v1339
            %v1344 = vadd.f32 %v1267, %v1341
            %1345 = vst [vmem:[#allocation6] sm:$0xff] %v1343
            %1346 = vst [vmem:[#allocation6 + $0x8] sm:$0xff] %v1344
          $region128: #{tpu_custom_call.1} parent=119 // pred_fallthru
            _
          %p1347 = scmp.eq.s32.totalorder %s36, 1
          // Predicated region
          $region129: #{tpu_custom_call.1} parent=119 // pred_check
            %p1348 = pneg %p1347
          $region130: #{tpu_custom_call.1} parent=119 // pred_check_branch
            %1350 = sbr.rel (%p1348) target = $region132
          $region131: #{tpu_custom_call.1} parent=119 // pred_region
            %s1351 = smul.u32 %s36, 8
            %v1352 = vlaneseq
            %v1353 = vshrl.u32 %v1352, 7
            %v1354 = vstv %s1351
            %v1355 = vadd.s32 %v1354, %v1353
            %vm1356 = vcmp.lt.s32.totalorder %v1355, 12
            %v1357 = vsel %vm1356, 1, 0
            %vm1358 = vcmp.eq.s32.totalorder %v1357, 1
            %v1359 = vsel %vm1358, %v1241, 0.0
            %v1360 = vsel %vm1358, %v1242, 0.0
            %v1361 = vlaneseq
            %v1362 = vand.u32 %v1361, 127
            %v1363 = vadd.s32 %v1354, %v1362
            %1364 = vset.pattern.permute.xlu0 0
            %1365 = vperm.xlu0 %1364, %v1243
            %v1366 = vpop.permute.xlu0 %1365
            %vm1367 = vcmp.ge.s32.totalorder %v1363, %v1366
            %v1368 = vadd.s32 %v1243, %v1244
            %1369 = vset.pattern.permute.xlu0 0
            %1370 = vperm.xlu0 %1369, %v1368
            %v1371 = vpop.permute.xlu0 %1370
            %vm1372 = vcmp.lt.s32.totalorder %v1363, %v1371
            %vm1373 = vmand %vm1367, %vm1372
            %v1374 = vsel %vm1373, 1, 0
            %v1375 = vcvt.s32.f32 %v1374
            %v1376 = vld [vmem:[#allocation6] sm:$0xff]
            %v1377 = vld [vmem:[#allocation6 + $0x8] sm:$0xff]
            %vm1378 = vcmask 64512
            %v1380 = vsel %vm1378, %v1375, 0
            %1382 = vmatprep.subr.mxu0 %v1360
            %1383 = vmatpush1.msra.mxu0 %v1359
            %1384 = vmatprep.subr.mxu0 0.0
            %1385 = vmatpush1.msra.mxu0 0.0
            %1386 = vmatprep.subr.mxu0 0.0
            %1387 = vmatpush1.msra.mxu0 0.0
            %1388 = vmatprep.subr.mxu0 0.0
            %1389 = vmatpush1.msra.mxu0 0.0
            %1390 = vmatprep.subr.mxu0 0.0
            %1391 = vmatpush1.msra.mxu0 0.0
            %1392 = vmatprep.subr.mxu0 0.0
            %1393 = vmatpush1.msra.mxu0 0.0
            %1394 = vmatprep.subr.mxu0 0.0
            %1395 = vmatpush1.msra.mxu0 0.0
            %1396 = vmatprep.subr.mxu0 0.0
            %1397 = vmatpush1.msra.mxu0 0.0
            %1398 = vmatprep.subr.mxu0 0.0
            %1399 = vmatpush1.msra.mxu0 0.0
            %1400 = vmatprep.subr.mxu0 0.0
            %1401 = vmatpush1.msra.mxu0 0.0
            %1402 = vmatprep.subr.mxu0 0.0
            %1403 = vmatpush1.msra.mxu0 0.0
            %1404 = vmatprep.subr.mxu0 0.0
            %1405 = vmatpush1.msra.mxu0 0.0
            %1406 = vmatprep.subr.mxu0 0.0
            %1407 = vmatpush1.msra.mxu0 0.0
            %1408 = vmatprep.subr.mxu0 0.0
            %1409 = vmatpush1.msra.mxu0 0.0
            %1410 = vmatprep.subr.mxu0 0.0
            %1411 = vmatpush1.msra.mxu0 0.0
            %1412 = vmatprep.subr.mxu0 0.0
            %1413 = vmatpush1.msra.mxu0 0.0
            %1414 = vmatprep.subr.mxu0 0.0
            %1415 = vmatpush1.msra.mxu0 0.0
            %1416 = vmatprep.subr.mxu0 0.0
            %1417 = vmatpush1.msra.mxu0 0.0
            %1418 = vmatprep.subr.mxu0 0.0
            %1419 = vmatpush1.msra.mxu0 0.0
            %1420 = vmatprep.subr.mxu0 0.0
            %1421 = vmatpush1.msra.mxu0 0.0
            %1422 = vmatprep.subr.mxu0 0.0
            %1423 = vmatpush1.msra.mxu0 0.0
            %1424 = vmatprep.subr.mxu0 0.0
            %1425 = vmatpush1.msra.mxu0 0.0
            %1426 = vmatprep.subr.mxu0 0.0
            %1427 = vmatpush1.msra.mxu0 0.0
            %1428 = vmatprep.subr.mxu0 0.0
            %1429 = vmatpush1.msra.mxu0 0.0
            %1430 = vmatprep.subr.mxu0 0.0
            %1431 = vmatpush1.msra.mxu0 0.0
            %1432 = vmatprep.subr.mxu0 0.0
            %1433 = vmatpush1.msra.mxu0 0.0
            %1434 = vmatprep.subr.mxu0 0.0
            %1435 = vmatpush1.msra.mxu0 0.0
            %1436 = vmatprep.subr.mxu0 0.0
            %1437 = vmatpush1.msra.mxu0 0.0
            %1438 = vmatprep.subr.mxu0 0.0
            %1439 = vmatpush1.msra.mxu0 0.0
            %1440 = vmatprep.subr.mxu0 0.0
            %1441 = vmatpush1.msra.mxu0 0.0
            %1442 = vmatprep.subr.mxu0 0.0
            %1443 = vmatpush1.msra.mxu0 0.0
            %1444 = vmatprep.subr.mxu0 0.0
            %1445 = vmatpush1.msra.mxu0 0.0
            %1446 = vmatprep.mubr.f32.mxu0 0.0
            %1447 = vmatmul.mubr.f32.gmra.mrb[0].mxu0 %v1380
            %v1448 = vpop.f32.mrb[0].mxu0
            %v1449 = vadd.f32 0.0, %v1448
            %v1450 = vpop.f32.mrb[0].mxu0
            %v1451 = vadd.f32 0.0, %v1450
            %1452 = vdwg.mxu0
            %v1453 = vadd.f32 %v1376, %v1449
            %v1454 = vadd.f32 %v1377, %v1451
            %1455 = vst [vmem:[#allocation6] sm:$0xff] %v1453
            %1456 = vst [vmem:[#allocation6 + $0x8] sm:$0xff] %v1454
            %v1457 = vcvt.s32.f32 %v1244
            %v1458 = vmax.f32 %v1457, 1.0
            %v1459 = vrcp.pop %v1458
            %v1460 = vmul.f32 1.0, %v1459
            %v1461 = vld [vmem:[#allocation6] sm:$0xff]
            %v1462 = vld [vmem:[#allocation6 + $0x8] sm:$0xff]
            %1464 = vset.pattern.permute.xlu0 0
            %1465 = vperm.xlu0 %1464, %v1460
            %v1466 = vpop.permute.xlu0 %1465
            %v1468 = vmul.f32 %v1461, %v1466
            %v1469 = vmul.f32 %v1462, %v1466
            %v1470 = vld [vmem:[#allocation12] sm:$0xff]
            %v1471 = vld [vmem:[#allocation12 + $0x8] sm:$0xff]
            %v1472 = vld [vmem:[#allocation12 + $0x10] sm:$0xff]
            %v1473 = vld [vmem:[#allocation12 + $0x18] sm:$0xff]
            %v1474 = vld [vmem:[#allocation12 + $0x20] sm:$0xff]
            %v1475 = vld [vmem:[#allocation12 + $0x28] sm:$0xff]
            %v1476 = vld [vmem:[#allocation12 + $0x30] sm:$0xff]
            %v1477 = vld [vmem:[#allocation12 + $0x38] sm:$0xff]
            %v1478 = vld [vmem:[#allocation12 + $0x40] sm:$0xff]
            %v1479 = vld [vmem:[#allocation12 + $0x48] sm:$0xff]
            %v1480 = vld [vmem:[#allocation12 + $0x50] sm:$0xff]
            %v1481 = vld [vmem:[#allocation12 + $0x58] sm:$0xff]
            %v1482 = vld [vmem:[#allocation12 + $0x60] sm:$0xff]
            %v1483 = vld [vmem:[#allocation12 + $0x68] sm:$0xff]
            %v1484 = vld [vmem:[#allocation12 + $0x70] sm:$0xff]
            %v1485 = vld [vmem:[#allocation12 + $0x78] sm:$0xff]
            %v1486 = vld [vmem:[#allocation12 + $0x80] sm:$0xff]
            %v1487 = vld [vmem:[#allocation12 + $0x88] sm:$0xff]
            %v1488 = vld [vmem:[#allocation12 + $0x90] sm:$0xff]
            %v1489 = vld [vmem:[#allocation12 + $0x98] sm:$0xff]
            %v1490 = vld [vmem:[#allocation12 + $0xa0] sm:$0xff]
            %v1491 = vld [vmem:[#allocation12 + $0xa8] sm:$0xff]
            %v1492 = vld [vmem:[#allocation12 + $0xb0] sm:$0xff]
            %v1493 = vld [vmem:[#allocation12 + $0xb8] sm:$0xff]
            %v1494 = vld [vmem:[#allocation12 + $0xc0] sm:$0xff]
            %v1495 = vld [vmem:[#allocation12 + $0xc8] sm:$0xff]
            %v1496 = vld [vmem:[#allocation12 + $0xd0] sm:$0xff]
            %v1497 = vld [vmem:[#allocation12 + $0xd8] sm:$0xff]
            %v1498 = vld [vmem:[#allocation12 + $0xe0] sm:$0xff]
            %v1499 = vld [vmem:[#allocation12 + $0xe8] sm:$0xff]
            %v1500 = vld [vmem:[#allocation12 + $0xf0] sm:$0xff]
            %v1501 = vld [vmem:[#allocation12 + $0xf8] sm:$0xff]
            %v1502 = vld [vmem:[%s10] sm:$0x1]
            %v1504 = vlaneseq
            %v1505 = vshrl.u32 %v1504, 7
            %v1506 = vsub.s32 0, %v1505
            %v1507 = vrot.slane %v1502, %v1506
            %1509 = vmatprep.subr.mxu0 0.0
            %1510 = vmatpush1.msra.mxu0 %v1470
            %1511 = vmatprep.subr.mxu0 0.0
            %1512 = vmatpush1.msra.mxu0 %v1471
            %1513 = vmatprep.subr.mxu0 0.0
            %1514 = vmatpush1.msra.mxu0 %v1472
            %1515 = vmatprep.subr.mxu0 0.0
            %1516 = vmatpush1.msra.mxu0 %v1473
            %1517 = vmatprep.subr.mxu0 0.0
            %1518 = vmatpush1.msra.mxu0 %v1474
            %1519 = vmatprep.subr.mxu0 0.0
            %1520 = vmatpush1.msra.mxu0 %v1475
            %1521 = vmatprep.subr.mxu0 0.0
            %1522 = vmatpush1.msra.mxu0 %v1476
            %1523 = vmatprep.subr.mxu0 0.0
            %1524 = vmatpush1.msra.mxu0 %v1477
            %1525 = vmatprep.subr.mxu0 0.0
            %1526 = vmatpush1.msra.mxu0 %v1478
            %1527 = vmatprep.subr.mxu0 0.0
            %1528 = vmatpush1.msra.mxu0 %v1479
            %1529 = vmatprep.subr.mxu0 0.0
            %1530 = vmatpush1.msra.mxu0 %v1480
            %1531 = vmatprep.subr.mxu0 0.0
            %1532 = vmatpush1.msra.mxu0 %v1481
            %1533 = vmatprep.subr.mxu0 0.0
            %1534 = vmatpush1.msra.mxu0 %v1482
            %1535 = vmatprep.subr.mxu0 0.0
            %1536 = vmatpush1.msra.mxu0 %v1483
            %1537 = vmatprep.subr.mxu0 0.0
            %1538 = vmatpush1.msra.mxu0 %v1484
            %1539 = vmatprep.subr.mxu0 0.0
            %1540 = vmatpush1.msra.mxu0 %v1485
            %1541 = vmatprep.subr.mxu0 0.0
            %1542 = vmatpush1.msra.mxu0 %v1486
            %1543 = vmatprep.subr.mxu0 0.0
            %1544 = vmatpush1.msra.mxu0 %v1487
            %1545 = vmatprep.subr.mxu0 0.0
            %1546 = vmatpush1.msra.mxu0 %v1488
            %1547 = vmatprep.subr.mxu0 0.0
            %1548 = vmatpush1.msra.mxu0 %v1489
            %1549 = vmatprep.subr.mxu0 0.0
            %1550 = vmatpush1.msra.mxu0 %v1490
            %1551 = vmatprep.subr.mxu0 0.0
            %1552 = vmatpush1.msra.mxu0 %v1491
            %1553 = vmatprep.subr.mxu0 0.0
            %1554 = vmatpush1.msra.mxu0 %v1492
            %1555 = vmatprep.subr.mxu0 0.0
            %1556 = vmatpush1.msra.mxu0 %v1493
            %1557 = vmatprep.subr.mxu0 0.0
            %1558 = vmatpush1.msra.mxu0 %v1494
            %1559 = vmatprep.subr.mxu0 0.0
            %1560 = vmatpush1.msra.mxu0 %v1495
            %1561 = vmatprep.subr.mxu0 0.0
            %1562 = vmatpush1.msra.mxu0 %v1496
            %1563 = vmatprep.subr.mxu0 0.0
            %1564 = vmatpush1.msra.mxu0 %v1497
            %1565 = vmatprep.subr.mxu0 0.0
            %1566 = vmatpush1.msra.mxu0 %v1498
            %1567 = vmatprep.subr.mxu0 0.0
            %1568 = vmatpush1.msra.mxu0 %v1499
            %1569 = vmatprep.subr.mxu0 0.0
            %1570 = vmatpush1.msra.mxu0 %v1500
            %1571 = vmatprep.subr.mxu0 0.0
            %1572 = vmatpush1.msra.mxu0 %v1501
            %1573 = vmatprep.mubr.f32.mxu0 %v1469
            %1574 = vmatmul.mubr.f32.gmra.mrb[0].mxu0 %v1468
            %v1575 = vpop.f32.mrb[0].mxu0
            %v1576 = vadd.f32 %v1507, %v1575
            %v1577 = vpop.f32.mrb[0].mxu0
            %1578 = vdwg.mxu0
            %v1579 = vld [vmem:[%s11] sm:$0xff]
            %v1580 = vld [vmem:[%s11 + $0x8] sm:$0xff]
            %v1581 = vld [vmem:[%s11 + $0x10] sm:$0xff]
            %v1582 = vld [vmem:[%s11 + $0x18] sm:$0xff]
            %v1583 = vld [vmem:[%s11 + $0x20] sm:$0xff]
            %v1584 = vld [vmem:[%s11 + $0x28] sm:$0xff]
            %v1585 = vld [vmem:[%s11 + $0x30] sm:$0xff]
            %v1586 = vld [vmem:[%s11 + $0x38] sm:$0xff]
            %v1587 = vld [vmem:[%s11 + $0x40] sm:$0xff]
            %v1588 = vld [vmem:[%s11 + $0x48] sm:$0xff]
            %v1589 = vld [vmem:[%s11 + $0x50] sm:$0xff]
            %v1590 = vld [vmem:[%s11 + $0x58] sm:$0xff]
            %v1591 = vld [vmem:[%s11 + $0x60] sm:$0xff]
            %v1592 = vld [vmem:[%s11 + $0x68] sm:$0xff]
            %v1593 = vld [vmem:[%s11 + $0x70] sm:$0xff]
            %v1594 = vld [vmem:[%s11 + $0x78] sm:$0xff]
            %v1595 = vld [vmem:[%s12] sm:$0x1]
            %v1597 = vlaneseq
            %v1598 = vshrl.u32 %v1597, 7
            %v1599 = vsub.s32 0, %v1598
            %v1600 = vrot.slane %v1595, %v1599
            %1602 = vmatprep.subr.mxu0 0.0
            %1603 = vmatpush1.msra.mxu0 %v1579
            %1604 = vmatprep.subr.mxu0 0.0
            %1605 = vmatpush1.msra.mxu0 %v1580
            %1606 = vmatprep.subr.mxu0 0.0
            %1607 = vmatpush1.msra.mxu0 %v1581
            %1608 = vmatprep.subr.mxu0 0.0
            %1609 = vmatpush1.msra.mxu0 %v1582
            %1610 = vmatprep.subr.mxu0 0.0
            %1611 = vmatpush1.msra.mxu0 %v1583
            %1612 = vmatprep.subr.mxu0 0.0
            %1613 = vmatpush1.msra.mxu0 %v1584
            %1614 = vmatprep.subr.mxu0 0.0
            %1615 = vmatpush1.msra.mxu0 %v1585
            %1616 = vmatprep.subr.mxu0 0.0
            %1617 = vmatpush1.msra.mxu0 %v1586
            %1618 = vmatprep.subr.mxu0 0.0
            %1619 = vmatpush1.msra.mxu0 %v1587
            %1620 = vmatprep.subr.mxu0 0.0
            %1621 = vmatpush1.msra.mxu0 %v1588
            %1622 = vmatprep.subr.mxu0 0.0
            %1623 = vmatpush1.msra.mxu0 %v1589
            %1624 = vmatprep.subr.mxu0 0.0
            %1625 = vmatpush1.msra.mxu0 %v1590
            %1626 = vmatprep.subr.mxu0 0.0
            %1627 = vmatpush1.msra.mxu0 %v1591
            %1628 = vmatprep.subr.mxu0 0.0
            %1629 = vmatpush1.msra.mxu0 %v1592
            %1630 = vmatprep.subr.mxu0 0.0
            %1631 = vmatpush1.msra.mxu0 %v1593
            %1632 = vmatprep.subr.mxu0 0.0
            %1633 = vmatpush1.msra.mxu0 %v1594
            %1634 = vmatprep.subr.mxu0 0.0
            %1635 = vmatpush1.msra.mxu0 0.0
            %1636 = vmatprep.subr.mxu0 0.0
            %1637 = vmatpush1.msra.mxu0 0.0
            %1638 = vmatprep.subr.mxu0 0.0
            %1639 = vmatpush1.msra.mxu0 0.0
            %1640 = vmatprep.subr.mxu0 0.0
            %1641 = vmatpush1.msra.mxu0 0.0
            %1642 = vmatprep.subr.mxu0 0.0
            %1643 = vmatpush1.msra.mxu0 0.0
            %1644 = vmatprep.subr.mxu0 0.0
            %1645 = vmatpush1.msra.mxu0 0.0
            %1646 = vmatprep.subr.mxu0 0.0
            %1647 = vmatpush1.msra.mxu0 0.0
            %1648 = vmatprep.subr.mxu0 0.0
            %1649 = vmatpush1.msra.mxu0 0.0
            %1650 = vmatprep.subr.mxu0 0.0
            %1651 = vmatpush1.msra.mxu0 0.0
            %1652 = vmatprep.subr.mxu0 0.0
            %1653 = vmatpush1.msra.mxu0 0.0
            %1654 = vmatprep.subr.mxu0 0.0
            %1655 = vmatpush1.msra.mxu0 0.0
            %1656 = vmatprep.subr.mxu0 0.0
            %1657 = vmatpush1.msra.mxu0 0.0
            %1658 = vmatprep.subr.mxu0 0.0
            %1659 = vmatpush1.msra.mxu0 0.0
            %1660 = vmatprep.subr.mxu0 0.0
            %1661 = vmatpush1.msra.mxu0 0.0
            %1662 = vmatprep.subr.mxu0 0.0
            %1663 = vmatpush1.msra.mxu0 0.0
            %1664 = vmatprep.subr.mxu0 0.0
            %1665 = vmatpush1.msra.mxu0 0.0
            %1666 = vmatprep.mubr.f32.mxu0 0.0
            %1667 = vmatmul.mubr.f32.gmra.mrb[0].mxu0 %v1576
            %v1668 = vpop.f32.mrb[0].mxu0
            %v1669 = vadd.f32 %v1600, %v1668
            %v1670 = vpop.f32.mrb[0].mxu0
            %1671 = vdwg.mxu0
            %vm1672 = vcmp.lt.s32.totalorder %v1353, 3
            %v1673 = vsel %vm1672, 1, 0
            %v1674 = vcvt.s32.f32 %v1673
            %v1675 = vmul.f32 %v1669, %v1674
            %v1676 = vrot.slane %v1675, 4
            %v1677 = vadd.f32 %v1675, %v1676
            %v1678 = vrot.slane %v1677, 2
            %v1679 = vadd.f32 %v1677, %v1678
            %v1680 = vrot.slane %v1679, 1
            %v1681 = vadd.f32 %v1679, %v1680
            %v1682 = vmul.f32 %v1681, 0.33333334
            %v1683 = vmul.f32 %v1669, %v1669
            %v1684 = vmul.f32 %v1683, %v1674
            %v1685 = vrot.slane %v1684, 4
            %v1686 = vadd.f32 %v1684, %v1685
            %v1687 = vrot.slane %v1686, 2
            %v1688 = vadd.f32 %v1686, %v1687
            %v1689 = vrot.slane %v1688, 1
            %v1690 = vadd.f32 %v1688, %v1689
            %v1691 = vmul.f32 %v1690, 0.33333334
            %v1692 = vmul.f32 %v1682, %v1682
            %v1693 = vsub.f32 %v1691, %v1692
            %v1694 = vmax.f32 %v1693, 0.0
            %v1695 = vsub.f32 %v1669, %v1682
            %v1696 = vadd.f32 %v1694, 1e-05
            %v1697 = vrsqrt.pop %v1696
            %v1698 = vmul.f32 %v1695, %v1697
            %v1699 = vld [vmem:[%s13] sm:$0x1]
            %v1701 = vlaneseq
            %v1702 = vshrl.u32 %v1701, 7
            %v1703 = vsub.s32 0, %v1702
            %v1704 = vrot.slane %v1699, %v1703
            %v1706 = vmul.f32 %v1698, %v1704
            %v1707 = vld [vmem:[%s14] sm:$0x1]
            %v1709 = vlaneseq
            %v1710 = vshrl.u32 %v1709, 7
            %v1711 = vsub.s32 0, %v1710
            %v1712 = vrot.slane %v1707, %v1711
            %v1714 = vadd.f32 %v1706, %v1712
            %v1715 = vmax.f32 %v1714, 0.0
            %v1716 = vld [vmem:[%s15] sm:$0xff]
            %v1717 = vld [vmem:[%s15 + $0x8] sm:$0xff]
            %v1718 = vld [vmem:[%s15 + $0x10] sm:$0xff]
            %v1719 = vld [vmem:[%s15 + $0x18] sm:$0xff]
            %v1720 = vld [vmem:[%s15 + $0x20] sm:$0xff]
            %v1721 = vld [vmem:[%s15 + $0x28] sm:$0xff]
            %v1722 = vld [vmem:[%s15 + $0x30] sm:$0xff]
            %v1723 = vld [vmem:[%s15 + $0x38] sm:$0xff]
            %v1724 = vld [vmem:[%s15 + $0x40] sm:$0xff]
            %v1725 = vld [vmem:[%s15 + $0x48] sm:$0xff]
            %v1726 = vld [vmem:[%s15 + $0x50] sm:$0xff]
            %v1727 = vld [vmem:[%s15 + $0x58] sm:$0xff]
            %v1728 = vld [vmem:[%s15 + $0x60] sm:$0xff]
            %v1729 = vld [vmem:[%s15 + $0x68] sm:$0xff]
            %v1730 = vld [vmem:[%s15 + $0x70] sm:$0xff]
            %v1731 = vld [vmem:[%s15 + $0x78] sm:$0xff]
            %v1732 = vld [vmem:[%s16] sm:$0x1]
            %v1734 = vlaneseq
            %v1735 = vshrl.u32 %v1734, 7
            %v1736 = vsub.s32 0, %v1735
            %v1737 = vrot.slane %v1732, %v1736
            %1739 = vmatprep.subr.mxu0 0.0
            %1740 = vmatpush1.msra.mxu0 %v1716
            %1741 = vmatprep.subr.mxu0 0.0
            %1742 = vmatpush1.msra.mxu0 %v1717
            %1743 = vmatprep.subr.mxu0 0.0
            %1744 = vmatpush1.msra.mxu0 %v1718
            %1745 = vmatprep.subr.mxu0 0.0
            %1746 = vmatpush1.msra.mxu0 %v1719
            %1747 = vmatprep.subr.mxu0 0.0
            %1748 = vmatpush1.msra.mxu0 %v1720
            %1749 = vmatprep.subr.mxu0 0.0
            %1750 = vmatpush1.msra.mxu0 %v1721
            %1751 = vmatprep.subr.mxu0 0.0
            %1752 = vmatpush1.msra.mxu0 %v1722
            %1753 = vmatprep.subr.mxu0 0.0
            %1754 = vmatpush1.msra.mxu0 %v1723
            %1755 = vmatprep.subr.mxu0 0.0
            %1756 = vmatpush1.msra.mxu0 %v1724
            %1757 = vmatprep.subr.mxu0 0.0
            %1758 = vmatpush1.msra.mxu0 %v1725
            %1759 = vmatprep.subr.mxu0 0.0
            %1760 = vmatpush1.msra.mxu0 %v1726
            %1761 = vmatprep.subr.mxu0 0.0
            %1762 = vmatpush1.msra.mxu0 %v1727
            %1763 = vmatprep.subr.mxu0 0.0
            %1764 = vmatpush1.msra.mxu0 %v1728
            %1765 = vmatprep.subr.mxu0 0.0
            %1766 = vmatpush1.msra.mxu0 %v1729
            %1767 = vmatprep.subr.mxu0 0.0
            %1768 = vmatpush1.msra.mxu0 %v1730
            %1769 = vmatprep.subr.mxu0 0.0
            %1770 = vmatpush1.msra.mxu0 %v1731
            %1771 = vmatprep.subr.mxu0 0.0
            %1772 = vmatpush1.msra.mxu0 0.0
            %1773 = vmatprep.subr.mxu0 0.0
            %1774 = vmatpush1.msra.mxu0 0.0
            %1775 = vmatprep.subr.mxu0 0.0
            %1776 = vmatpush1.msra.mxu0 0.0
            %1777 = vmatprep.subr.mxu0 0.0
            %1778 = vmatpush1.msra.mxu0 0.0
            %1779 = vmatprep.subr.mxu0 0.0
            %1780 = vmatpush1.msra.mxu0 0.0
            %1781 = vmatprep.subr.mxu0 0.0
            %1782 = vmatpush1.msra.mxu0 0.0
            %1783 = vmatprep.subr.mxu0 0.0
            %1784 = vmatpush1.msra.mxu0 0.0
            %1785 = vmatprep.subr.mxu0 0.0
            %1786 = vmatpush1.msra.mxu0 0.0
            %1787 = vmatprep.subr.mxu0 0.0
            %1788 = vmatpush1.msra.mxu0 0.0
            %1789 = vmatprep.subr.mxu0 0.0
            %1790 = vmatpush1.msra.mxu0 0.0
            %1791 = vmatprep.subr.mxu0 0.0
            %1792 = vmatpush1.msra.mxu0 0.0
            %1793 = vmatprep.subr.mxu0 0.0
            %1794 = vmatpush1.msra.mxu0 0.0
            %1795 = vmatprep.subr.mxu0 0.0
            %1796 = vmatpush1.msra.mxu0 0.0
            %1797 = vmatprep.subr.mxu0 0.0
            %1798 = vmatpush1.msra.mxu0 0.0
            %1799 = vmatprep.subr.mxu0 0.0
            %1800 = vmatpush1.msra.mxu0 0.0
            %1801 = vmatprep.subr.mxu0 0.0
            %1802 = vmatpush1.msra.mxu0 0.0
            %1803 = vmatprep.mubr.f32.mxu0 0.0
            %1804 = vmatmul.mubr.f32.gmra.mrb[0].mxu0 %v1715
            %v1805 = vpop.f32.mrb[0].mxu0
            %v1806 = vadd.f32 %v1737, %v1805
            %v1807 = vpop.f32.mrb[0].mxu0
            %1808 = vdwg.mxu0
            %1809 = vst.msk [vmem:[#allocation13] sm:$0xff] %vm1378, %v1806
          $region132: #{tpu_custom_call.1} parent=119 // pred_fallthru
            _
        $region120: #{tpu_custom_call.1} parent=87 // pred_fallthru
          _
        // Predicated region
        $region133: #{tpu_custom_call.1} parent=87 // pred_check
          %p1810 = pneg %p418
        $region134: #{tpu_custom_call.1} parent=87 // pred_check_branch
          %1812 = sbr.rel (%p1810) target = $region136
        $region135: #{tpu_custom_call.1} parent=87 // pred_region
          %s1814 = ssub.s32 128, 128
          %1815 = vsyncadd [#allocation9], %s1814
          %s1817 = sshll.u32 [#allocation13], 4
          %s1818 = int_to_ptr.vmem [resolvable:$true] %s1817
          %1820 = dma.vmem_to_hbm [thread:$0]  %s1818, 128, %s17, [#allocation9]
        $region136: #{tpu_custom_call.1} parent=87 // pred_fallthru
          _
        // Predicated region
        $region137: #{tpu_custom_call.1} parent=87 // pred_check
          %p1821 = pneg %p418
        $region138: #{tpu_custom_call.1} parent=87 // pred_check_branch
          %1823 = sbr.rel (%p1821) target = $region140
        $region139: #{tpu_custom_call.1} parent=87 // pred_region
          %1824 = dma.done [#allocation9], 128
        $region140: #{tpu_custom_call.1} parent=87 // pred_fallthru
          _
      $region88: #{tpu_custom_call.1} parent=5 // pred_fallthru
        _
      %p1825 = scmp.le.s32.totalorder 2, %s26
      // Predicated region
      $region141: #{tpu_custom_call.1} parent=5 // pred_check
        %p1826 = pneg %p1825
      $region142: #{tpu_custom_call.1} parent=5 // pred_check_branch
        %1828 = sbr.rel (%p1826) target = $region144
      $region143: #{tpu_custom_call.1} parent=5 // pred_region
        %s1829 = ssub.s32 %s26, 2
      $region144: #{tpu_custom_call.1} parent=5 // pred_fallthru
        _
    $region6: #{tpu_custom_call.1} parent=1 // loop_footer
      %s30 = sadd.s32 1, %s26
    $region7: #{tpu_custom_call.1} parent=1 // loop_footer_branch
      %25 = sbr.rel target = $region3
    $region8: #{tpu_custom_call.1} parent=1 // loop_exit
      _
    %1830 = vsyncpa [#allocation8], 1
    %s1831 = scalar_lea.sflag [#allocation8], 1
    %1832 = vsyncpa %s1831, 1
    %1833 = vsyncpa [#allocation11], 1
    %1834 = vsyncpa [#allocation9], 1
    %s1835 = scalar_lea.sflag [#allocation9], 1
    %1836 = vsyncpa %s1835, 1

</llo_original>
